<compile_context>
chip_gen: v7x
topology: tpu7x:2x2x1
jax: 0.10.0
libtpu: 0.0.40
codegen_flags: <defaults>
</compile_context>

<pallas_src>
import jax
import jax.numpy as jnp
from jax.experimental import pallas as pl
from jax.experimental.pallas import tpu as pltpu

HIDDEN = 250
OUT = 4
HIDDEN_PAD = 256   # 250 -> 256: multiple of 128 lanes
OUT_PAD = 128      # 4   -> 128: lane-dense output store


def _leaky_relu(v, slope=0.2):
    return jnp.where(v > 0, v, slope * v)


def fcn_critic_kernel(x_ref,
                      w1_ref, b1_ref,
                      w2_ref, b2_ref,
                      w3_ref, b3_ref,
                      w4_ref, b4_ref,
                      w5_ref, b5_ref,
                      o_ref):
    # x_ref : (TB, D)            bf16 tile of the flattened image batch
    # wK_ref: (in_pad, out_pad)  bf16, already transposed to (in, out) + zero-padded
    # bK_ref: (1, out_pad)       f32, zero-padded
    # o_ref : (TB, OUT_PAD)      f32
    def layer(h_bf16, w_ref, b_ref, activate):
        acc = jnp.dot(h_bf16, w_ref[...], preferred_element_type=jnp.float32)
        acc = acc + b_ref[...]
        if activate:
            acc = _leaky_relu(acc)
        return acc

    h = x_ref[...]                                            # bf16
    h = layer(h, w1_ref, b1_ref, True).astype(jnp.bfloat16)
    h = layer(h, w2_ref, b2_ref, True).astype(jnp.bfloat16)
    h = layer(h, w3_ref, b3_ref, True).astype(jnp.bfloat16)
    h = layer(h, w4_ref, b4_ref, True).astype(jnp.bfloat16)
    out = layer(h, w5_ref, b5_ref, False)                     # f32

    o_ref[...] = out.astype(o_ref.dtype)


def init_params(key, dims):
    """Deterministic init of Linear layers. dims = [D, 250, 250, 250, 250, 4].

    Weights are stored already transposed: (in, out); bias shape (1, out).
    """
    params = []
    for i in range(len(dims) - 1):
        fan_in, fan_out = dims[i], dims[i + 1]
        key, kw, kb = jax.random.split(key, 3)
        bound = 1.0 / jnp.sqrt(fan_in)
        w = jax.random.uniform(kw, (fan_in, fan_out), jnp.float32, -bound, bound)
        b = jax.random.uniform(kb, (1, fan_out), jnp.float32, -bound, bound)
        params.append((w, b))
    return params


def _pad_params(params):
    """Zero-pad weights/biases to lane-aligned dims; cast weights to bf16.

    Padding with zeros is exact: padded activation columns stay 0 through
    LeakyReLU, and padded weight rows multiply those zeros, contributing
    nothing to the real outputs.
    """
    padded = []
    n = len(params)
    for i, (w, b) in enumerate(params):
        in_dim, out_dim = w.shape
        in_pad = in_dim if i == 0 else HIDDEN_PAD
        out_pad = OUT_PAD if i == n - 1 else HIDDEN_PAD
        wp = jnp.zeros((in_pad, out_pad), jnp.float32).at[:in_dim, :out_dim].set(w)
        bp = jnp.zeros((1, out_pad), jnp.float32).at[:, :out_dim].set(b)
        padded.append((wp.astype(jnp.bfloat16), bp))
    return padded


def fcn_critic_mlp(x_flat, padded_params, *, max_batch_tile=256):
    """Run the 5-layer MLP inside a batch-tiled Pallas kernel.

    x_flat:        (B, D) float32, D a multiple of 128
    padded_params: output of _pad_params
    returns:       (B, 4) float32 logits
    """
    B, D = x_flat.shape

    # Batch tile: multiple of 8 sublanes, capped so a double-buffered
    # (TB, D) bf16 tile stays tiny relative to even v7x's 64 MiB VMEM.
    TB = min(max_batch_tile, max(8, ((B + 7) // 8) * 8))
    Bp = ((B + TB - 1) // TB) * TB
    if Bp != B:
        x_flat = jnp.pad(x_flat, ((0, Bp - B), (0, 0)))
    x_bf16 = x_flat.astype(jnp.bfloat16)

    flat_args = [x_bf16]
    in_specs = [pl.BlockSpec((TB, D), lambda i: (i, 0))]
    for w, b in padded_params:
        flat_args.append(w)
        flat_args.append(b)
        # Weights/biases: full-array blocks, same block index for every grid
        # step -> stay VMEM-resident, no re-DMA across batch tiles.
        in_specs.append(pl.BlockSpec(w.shape, lambda i: (0, 0)))
        in_specs.append(pl.BlockSpec(b.shape, lambda i: (0, 0)))

    out_spec = pl.BlockSpec((TB, OUT_PAD), lambda i: (i, 0))

    out = pl.pallas_call(
        fcn_critic_kernel,
        out_shape=jax.ShapeDtypeStruct((Bp, OUT_PAD), jnp.float32),
        grid=(Bp // TB,),
        in_specs=in_specs,
        out_specs=out_spec,
        compiler_params=pltpu.CompilerParams(
            dimension_semantics=("parallel",)),   # v7x: shard batch over 2 TCs
    )(*flat_args)

    return out[:B, :OUT]


def fcn_critic_forward(image, label, padded_params):
    """Full FCNCritic.forward semantics.

    image: (B, C, H, W) float32
    label: (B, Ncls, Hl, Wl) float32 (one-hot-ish over channel dim)
    """
    B = image.shape[0]
    # nn.Flatten(): (B, C*H*W), NCHW row-major flatten.
    x_flat = image.reshape(B, -1).astype(jnp.float32)

    logits = fcn_critic_mlp(x_flat, padded_params)            # (B, 4) via Pallas

    # flattened_label = label[:, :, 0, 0].argmax(1); model(image)[flattened_label]
    # TODO(synk): this indexes batch rows with class indices, faithfully
    # reproducing the original PyTorch forward.
    flattened_label = jnp.argmax(label[:, :, 0, 0], axis=1)
    return logits[flattened_label]                            # (B, 4)


def reference_forward(image, label, params):
    """Pure-JAX reference (same bf16 matmul / f32 elementwise numerics)."""
    B = image.shape[0]
    h = image.reshape(B, -1).astype(jnp.float32)
    for i, (w, b) in enumerate(params):
        h = jnp.dot(h.astype(jnp.bfloat16), w.astype(jnp.bfloat16),
                    preferred_element_type=jnp.float32) + b
        if i < len(params) - 1:
            h = jnp.where(h > 0, h, 0.2 * h)
    idx = jnp.argmax(label[:, :, 0, 0], axis=1)
    return h[idx]


if __name__ == "__main__":
    key = jax.random.PRNGKey(0)

    # Small shapes consistent with the module: img_shape = (4, 16, 16)
    B, C, H, W = 2, 4, 16, 16
    NUM_CLASSES = 4  # label channels; forward argmaxes over this dim

    k_img, k_lab, k_par = jax.random.split(key, 3)
    image = jax.random.normal(k_img, (B, C, H, W), jnp.float32)

    # One-hot labels broadcast over spatial dims (typical cGAN label maps).
    cls = jax.random.randint(k_lab, (B,), 0, NUM_CLASSES)
    label = jax.nn.one_hot(cls, NUM_CLASSES, dtype=jnp.float32)          # (B, Ncls)
    label = jnp.broadcast_to(label[:, :, None, None], (B, NUM_CLASSES, H, W))

    D = C * H * W  # 1024, already a multiple of 128 lanes
    params = init_params(k_par, [D, HIDDEN, HIDDEN, HIDDEN, HIDDEN, OUT])
    padded_params = _pad_params(params)

    out = fcn_critic_forward(image, label, padded_params)
    out = jax.block_until_ready(out)

    ref = reference_forward(image, label, params)
    assert out.shape == (B, OUT), out.shape
    assert jnp.allclose(out, ref, atol=2e-3, rtol=2e-3), (out, ref)

    print("KERNEL_OK")
</pallas_src>

<mosaic_0001>
module attributes {stable_mosaic.version = 11 : i64} {
  func.func @fcn_critic_kernel(%arg0: i32, %arg1: memref<8x1024xbf16, #tpu.memory_space<vmem>>, %arg2: memref<1024x256xbf16, #tpu.memory_space<vmem>>, %arg3: memref<1x256xf32, #tpu.memory_space<vmem>>, %arg4: memref<256x256xbf16, #tpu.memory_space<vmem>>, %arg5: memref<1x256xf32, #tpu.memory_space<vmem>>, %arg6: memref<256x256xbf16, #tpu.memory_space<vmem>>, %arg7: memref<1x256xf32, #tpu.memory_space<vmem>>, %arg8: memref<256x256xbf16, #tpu.memory_space<vmem>>, %arg9: memref<1x256xf32, #tpu.memory_space<vmem>>, %arg10: memref<256x128xbf16, #tpu.memory_space<vmem>>, %arg11: memref<1x128xf32, #tpu.memory_space<vmem>>, %arg12: memref<8x128xf32, #tpu.memory_space<vmem>>) attributes {dimension_semantics = [#tpu.dimension_semantics<parallel>], iteration_bounds = array<i64: 1>, scalar_prefetch = 0 : i64, scratch_operands = 0 : i64, tpu.core_type = #tpu.core_type<tc>, window_params = [{transform_indices = @transform_0, window_bounds = array<i64: 8, 1024>}, {pipeline_mode = #tpu.pipeline_mode<synchronous>, transform_indices = @transform_1, window_bounds = array<i64: 1024, 256>}, {pipeline_mode = #tpu.pipeline_mode<synchronous>, transform_indices = @transform_2, window_bounds = array<i64: 1, 256>}, {pipeline_mode = #tpu.pipeline_mode<synchronous>, transform_indices = @transform_3, window_bounds = array<i64: 256, 256>}, {pipeline_mode = #tpu.pipeline_mode<synchronous>, transform_indices = @transform_4, window_bounds = array<i64: 1, 256>}, {pipeline_mode = #tpu.pipeline_mode<synchronous>, transform_indices = @transform_5, window_bounds = array<i64: 256, 256>}, {pipeline_mode = #tpu.pipeline_mode<synchronous>, transform_indices = @transform_6, window_bounds = array<i64: 1, 256>}, {pipeline_mode = #tpu.pipeline_mode<synchronous>, transform_indices = @transform_7, window_bounds = array<i64: 256, 256>}, {pipeline_mode = #tpu.pipeline_mode<synchronous>, transform_indices = @transform_8, window_bounds = array<i64: 1, 256>}, {pipeline_mode = #tpu.pipeline_mode<synchronous>, transform_indices = @transform_9, window_bounds = array<i64: 256, 128>}, {pipeline_mode = #tpu.pipeline_mode<synchronous>, transform_indices = @transform_10, window_bounds = array<i64: 1, 128>}, {transform_indices = @transform_11, window_bounds = array<i64: 8, 128>}]} {
    %c0 = arith.constant 0 : index
    %c0_0 = arith.constant 0 : index
    %0 = vector.load %arg1[%c0, %c0_0] : memref<8x1024xbf16, #tpu.memory_space<vmem>>, vector<8x1024xbf16>
    %c0_1 = arith.constant 0 : index
    %c0_2 = arith.constant 0 : index
    %1 = vector.load %arg2[%c0_1, %c0_2] : memref<1024x256xbf16, #tpu.memory_space<vmem>>, vector<1024x256xbf16>
    %cst = arith.constant dense<0.000000e+00> : vector<8x256xf32>
    %2 = tpu.matmul %0, %1, %cst {dimension_numbers = #tpu.dot_dimension_numbers<[1], [0], [0], [1], [0, 0, 1, 1], [], []>} : vector<8x1024xbf16>, vector<1024x256xbf16>, vector<8x256xf32> -> vector<8x256xf32>
    %c0_3 = arith.constant 0 : index
    %c0_4 = arith.constant 0 : index
    %3 = vector.load %arg3[%c0_3, %c0_4] : memref<1x256xf32, #tpu.memory_space<vmem>>, vector<1x256xf32>
    %4 = vector.broadcast %3 : vector<1x256xf32> to vector<8x256xf32>
    %5 = arith.addf %2, %4 : vector<8x256xf32>
    %cst_5 = arith.constant 0.000000e+00 : f32
    %6 = vector.broadcast %cst_5 : f32 to vector<8x256xf32>
    %7 = arith.cmpf ogt, %5, %6 : vector<8x256xf32>
    %cst_6 = arith.constant 2.000000e-01 : f32
    %8 = vector.broadcast %cst_6 : f32 to vector<8x256xf32>
    %9 = arith.mulf %8, %5 : vector<8x256xf32>
    %10 = arith.select %7, %5, %9 : vector<8x256xi1>, vector<8x256xf32>
    %11 = arith.truncf %10 : vector<8x256xf32> to vector<8x256xbf16>
    %c0_7 = arith.constant 0 : index
    %c0_8 = arith.constant 0 : index
    %12 = vector.load %arg4[%c0_7, %c0_8] : memref<256x256xbf16, #tpu.memory_space<vmem>>, vector<256x256xbf16>
    %cst_9 = arith.constant dense<0.000000e+00> : vector<8x256xf32>
    %13 = tpu.matmul %11, %12, %cst_9 {dimension_numbers = #tpu.dot_dimension_numbers<[1], [0], [0], [1], [0, 0, 1, 1], [], []>} : vector<8x256xbf16>, vector<256x256xbf16>, vector<8x256xf32> -> vector<8x256xf32>
    %c0_10 = arith.constant 0 : index
    %c0_11 = arith.constant 0 : index
    %14 = vector.load %arg5[%c0_10, %c0_11] : memref<1x256xf32, #tpu.memory_space<vmem>>, vector<1x256xf32>
    %15 = vector.broadcast %14 : vector<1x256xf32> to vector<8x256xf32>
    %16 = arith.addf %13, %15 : vector<8x256xf32>
    %cst_12 = arith.constant 0.000000e+00 : f32
    %17 = vector.broadcast %cst_12 : f32 to vector<8x256xf32>
    %18 = arith.cmpf ogt, %16, %17 : vector<8x256xf32>
    %cst_13 = arith.constant 2.000000e-01 : f32
    %19 = vector.broadcast %cst_13 : f32 to vector<8x256xf32>
    %20 = arith.mulf %19, %16 : vector<8x256xf32>
    %21 = arith.select %18, %16, %20 : vector<8x256xi1>, vector<8x256xf32>
    %22 = arith.truncf %21 : vector<8x256xf32> to vector<8x256xbf16>
    %c0_14 = arith.constant 0 : index
    %c0_15 = arith.constant 0 : index
    %23 = vector.load %arg6[%c0_14, %c0_15] : memref<256x256xbf16, #tpu.memory_space<vmem>>, vector<256x256xbf16>
    %cst_16 = arith.constant dense<0.000000e+00> : vector<8x256xf32>
    %24 = tpu.matmul %22, %23, %cst_16 {dimension_numbers = #tpu.dot_dimension_numbers<[1], [0], [0], [1], [0, 0, 1, 1], [], []>} : vector<8x256xbf16>, vector<256x256xbf16>, vector<8x256xf32> -> vector<8x256xf32>
    %c0_17 = arith.constant 0 : index
    %c0_18 = arith.constant 0 : index
    %25 = vector.load %arg7[%c0_17, %c0_18] : memref<1x256xf32, #tpu.memory_space<vmem>>, vector<1x256xf32>
    %26 = vector.broadcast %25 : vector<1x256xf32> to vector<8x256xf32>
    %27 = arith.addf %24, %26 : vector<8x256xf32>
    %cst_19 = arith.constant 0.000000e+00 : f32
    %28 = vector.broadcast %cst_19 : f32 to vector<8x256xf32>
    %29 = arith.cmpf ogt, %27, %28 : vector<8x256xf32>
    %cst_20 = arith.constant 2.000000e-01 : f32
    %30 = vector.broadcast %cst_20 : f32 to vector<8x256xf32>
    %31 = arith.mulf %30, %27 : vector<8x256xf32>
    %32 = arith.select %29, %27, %31 : vector<8x256xi1>, vector<8x256xf32>
    %33 = arith.truncf %32 : vector<8x256xf32> to vector<8x256xbf16>
    %c0_21 = arith.constant 0 : index
    %c0_22 = arith.constant 0 : index
    %34 = vector.load %arg8[%c0_21, %c0_22] : memref<256x256xbf16, #tpu.memory_space<vmem>>, vector<256x256xbf16>
    %cst_23 = arith.constant dense<0.000000e+00> : vector<8x256xf32>
    %35 = tpu.matmul %33, %34, %cst_23 {dimension_numbers = #tpu.dot_dimension_numbers<[1], [0], [0], [1], [0, 0, 1, 1], [], []>} : vector<8x256xbf16>, vector<256x256xbf16>, vector<8x256xf32> -> vector<8x256xf32>
    %c0_24 = arith.constant 0 : index
    %c0_25 = arith.constant 0 : index
    %36 = vector.load %arg9[%c0_24, %c0_25] : memref<1x256xf32, #tpu.memory_space<vmem>>, vector<1x256xf32>
    %37 = vector.broadcast %36 : vector<1x256xf32> to vector<8x256xf32>
    %38 = arith.addf %35, %37 : vector<8x256xf32>
    %cst_26 = arith.constant 0.000000e+00 : f32
    %39 = vector.broadcast %cst_26 : f32 to vector<8x256xf32>
    %40 = arith.cmpf ogt, %38, %39 : vector<8x256xf32>
    %cst_27 = arith.constant 2.000000e-01 : f32
    %41 = vector.broadcast %cst_27 : f32 to vector<8x256xf32>
    %42 = arith.mulf %41, %38 : vector<8x256xf32>
    %43 = arith.select %40, %38, %42 : vector<8x256xi1>, vector<8x256xf32>
    %44 = arith.truncf %43 : vector<8x256xf32> to vector<8x256xbf16>
    %c0_28 = arith.constant 0 : index
    %c0_29 = arith.constant 0 : index
    %45 = vector.load %arg10[%c0_28, %c0_29] : memref<256x128xbf16, #tpu.memory_space<vmem>>, vector<256x128xbf16>
    %cst_30 = arith.constant dense<0.000000e+00> : vector<8x128xf32>
    %46 = tpu.matmul %44, %45, %cst_30 {dimension_numbers = #tpu.dot_dimension_numbers<[1], [0], [0], [1], [0, 0, 1, 1], [], []>} : vector<8x256xbf16>, vector<256x128xbf16>, vector<8x128xf32> -> vector<8x128xf32>
    %c0_31 = arith.constant 0 : index
    %c0_32 = arith.constant 0 : index
    %47 = vector.load %arg11[%c0_31, %c0_32] : memref<1x128xf32, #tpu.memory_space<vmem>>, vector<1x128xf32>
    %48 = vector.broadcast %47 : vector<1x128xf32> to vector<8x128xf32>
    %49 = arith.addf %46, %48 : vector<8x128xf32>
    %c0_33 = arith.constant 0 : index
    %c0_34 = arith.constant 0 : index
    %50 = vector.load %arg12[%c0_33, %c0_34] : memref<8x128xf32, #tpu.memory_space<vmem>>, vector<8x128xf32>
    tpu.vector_store %arg12[%c0_33, %c0_34], %49 {strides = array<i32>} : memref<8x128xf32, #tpu.memory_space<vmem>>, vector<8x128xf32>,
    return
  }
  func.func @transform_0(%arg0: i32) -> (i32, i32) {
    %c0_i32 = arith.constant 0 : i32
    %c0_i32_0 = arith.constant 0 : i32
    return %arg0, %c0_i32 : i32, i32
  }
  func.func @transform_1(%arg0: i32) -> (i32, i32) {
    %c0_i32 = arith.constant 0 : i32
    %c0_i32_0 = arith.constant 0 : i32
    %c0_i32_1 = arith.constant 0 : i32
    return %c0_i32, %c0_i32_0 : i32, i32
  }
  func.func @transform_2(%arg0: i32) -> (i32, i32) {
    %c0_i32 = arith.constant 0 : i32
    %c0_i32_0 = arith.constant 0 : i32
    %c0_i32_1 = arith.constant 0 : i32
    return %c0_i32, %c0_i32_0 : i32, i32
  }
  func.func @transform_3(%arg0: i32) -> (i32, i32) {
    %c0_i32 = arith.constant 0 : i32
    %c0_i32_0 = arith.constant 0 : i32
    %c0_i32_1 = arith.constant 0 : i32
    return %c0_i32, %c0_i32_0 : i32, i32
  }
  func.func @transform_4(%arg0: i32) -> (i32, i32) {
    %c0_i32 = arith.constant 0 : i32
    %c0_i32_0 = arith.constant 0 : i32
    %c0_i32_1 = arith.constant 0 : i32
    return %c0_i32, %c0_i32_0 : i32, i32
  }
  func.func @transform_5(%arg0: i32) -> (i32, i32) {
    %c0_i32 = arith.constant 0 : i32
    %c0_i32_0 = arith.constant 0 : i32
    %c0_i32_1 = arith.constant 0 : i32
    return %c0_i32, %c0_i32_0 : i32, i32
  }
  func.func @transform_6(%arg0: i32) -> (i32, i32) {
    %c0_i32 = arith.constant 0 : i32
    %c0_i32_0 = arith.constant 0 : i32
    %c0_i32_1 = arith.constant 0 : i32
    return %c0_i32, %c0_i32_0 : i32, i32
  }
  func.func @transform_7(%arg0: i32) -> (i32, i32) {
    %c0_i32 = arith.constant 0 : i32
    %c0_i32_0 = arith.constant 0 : i32
    %c0_i32_1 = arith.constant 0 : i32
    return %c0_i32, %c0_i32_0 : i32, i32
  }
  func.func @transform_8(%arg0: i32) -> (i32, i32) {
    %c0_i32 = arith.constant 0 : i32
    %c0_i32_0 = arith.constant 0 : i32
    %c0_i32_1 = arith.constant 0 : i32
    return %c0_i32, %c0_i32_0 : i32, i32
  }
  func.func @transform_9(%arg0: i32) -> (i32, i32) {
    %c0_i32 = arith.constant 0 : i32
    %c0_i32_0 = arith.constant 0 : i32
    %c0_i32_1 = arith.constant 0 : i32
    return %c0_i32, %c0_i32_0 : i32, i32
  }
  func.func @transform_10(%arg0: i32) -> (i32, i32) {
    %c0_i32 = arith.constant 0 : i32
    %c0_i32_0 = arith.constant 0 : i32
    %c0_i32_1 = arith.constant 0 : i32
    return %c0_i32, %c0_i32_0 : i32, i32
  }
  func.func @transform_11(%arg0: i32) -> (i32, i32) {
    %c0_i32 = arith.constant 0 : i32
    %c0_i32_0 = arith.constant 0 : i32
    return %arg0, %c0_i32 : i32, i32
  }
}

</mosaic_0001>

<llo_original>
// kernel: tpu_custom_call.1
$region0: #{tpu_custom_call.1}
  #allocation0 [shape = 'u32[]', space=smem, size = 0x4, offset = 0x4, fixed_abs, tag = 'smem constant byte address 0x4 - core index']
  #allocation1 [shape = 'u32[144,128]{1,0:T(1,128)}', space=vmem, size = 0x12000, scoped, tag = 'internal scratch']
  %s0 = inlined_call_operand.hbm [shape: bf16[8,1024], index: 0, kind: input, shape index: {}]
  %s1 = inlined_call_operand.hbm [shape: bf16[1024,256], index: 1, kind: input, shape index: {}]
  %s2 = inlined_call_operand.vmem [shape: f32[1,256], index: 2, kind: input, shape index: {}]
  %s3 = inlined_call_operand.hbm [shape: bf16[256,256], index: 3, kind: input, shape index: {}]
  %s4 = inlined_call_operand.vmem [shape: f32[1,256], index: 4, kind: input, shape index: {}]
  %s5 = inlined_call_operand.hbm [shape: bf16[256,256], index: 5, kind: input, shape index: {}]
  %s6 = inlined_call_operand.vmem [shape: f32[1,256], index: 6, kind: input, shape index: {}]
  %s7 = inlined_call_operand.hbm [shape: bf16[256,256], index: 7, kind: input, shape index: {}]
  %s8 = inlined_call_operand.vmem [shape: f32[1,256], index: 8, kind: input, shape index: {}]
  %s9 = inlined_call_operand.hbm [shape: bf16[256,128], index: 9, kind: input, shape index: {}]
  %s10 = inlined_call_operand.vmem [shape: f32[1,128], index: 10, kind: input, shape index: {}]
  %s11 = inlined_call_operand.hbm [shape: f32[8,128], index: 11, kind: output, shape index: {}]
  %s12 = sld [smem:[#allocation0]]
  $region78: #{tpu_custom_call.1} parent=0
    _
  %s14 = ssub.s32 1, %s12
  %s15 = scalar_select 0, %s14, %s12
  $region1: #{tpu_custom_call.1} parent=0
    #allocation2 [shape = 'u8[16384]{0}', space=vmem, size = 0x4000, scoped, tag = 'input window, operand 0, single buffered']
    #allocation3 [shape = 's32[1]{0}', space=sflag, size = 0x4, scoped, tag = 'scoped memory for tpu_custom_call.1']
    #allocation4 [shape = 's32[1]{0}', space=sflag, size = 0x4, scoped, tag = 'scoped memory for tpu_custom_call.1']
    #allocation5 [shape = 'u8[524288]{0}', space=vmem, size = 0x80000, scoped, tag = 'input window, operand 1, single buffered']
    #allocation6 [shape = 's32[1]{0}', space=sflag, size = 0x4, scoped, tag = 'scoped memory for tpu_custom_call.1']
    #allocation7 [shape = 'u8[131072]{0}', space=vmem, size = 0x20000, scoped, tag = 'input window, operand 3, single buffered']
    #allocation8 [shape = 'u8[131072]{0}', space=vmem, size = 0x20000, scoped, tag = 'input window, operand 5, single buffered']
    #allocation9 [shape = 's32[1]{0}', space=sflag, size = 0x4, scoped, tag = 'scoped memory for tpu_custom_call.1']
    #allocation10 [shape = 'u8[131072]{0}', space=vmem, size = 0x20000, scoped, tag = 'input window, operand 7, single buffered']
    #allocation11 [shape = 'u8[65536]{0}', space=vmem, size = 0x10000, scoped, tag = 'input window, operand 9, single buffered']
    #allocation12 [shape = 's32[1]{0}', space=sflag, size = 0x4, scoped, tag = 'scoped memory for tpu_custom_call.1']
    #allocation13 [shape = 'u8[4096]{0}', space=vmem, size = 0x1000, scoped, tag = 'output window, operand 0, single buffered']
    %16 = vsyncpa [#allocation3], 0
    %17 = vsyncpa [#allocation6], 0
    %18 = vsyncpa [#allocation9], 0
    %19 = vsyncpa [#allocation12], 0
    %20 = vsyncpa [#allocation4], 0
    // Predicated region
    $region2: #{tpu_custom_call.1} parent=1 // pred_check
      _
    $region3: #{tpu_custom_call.1} parent=1 // pred_check_branch
      %22 = sbr.rel (0) target = $region5
    $region4: #{tpu_custom_call.1} parent=1 // pred_region
      %s24 = ssub.s32 512, 512
      %25 = vsyncadd [#allocation3], %s24
      %s27 = sshll.u32 [#allocation2], 4
      %s28 = int_to_ptr.vmem [resolvable:$true] %s27
      %30 = dma.hbm_to_vmem [thread:$0]  %s0, 512, %s28, [#allocation3]
    $region5: #{tpu_custom_call.1} parent=1 // pred_fallthru
      _
    // Predicated region
    $region6: #{tpu_custom_call.1} parent=1 // pred_check
      _
    $region7: #{tpu_custom_call.1} parent=1 // pred_check_branch
      %32 = sbr.rel (0) target = $region9
    $region8: #{tpu_custom_call.1} parent=1 // pred_region
      %s34 = ssub.s32 16384, 16384
      %35 = vsyncadd [#allocation6], %s34
      %s36 = sshll.u32 [#allocation5], 4
      %s37 = int_to_ptr.vmem [resolvable:$true] %s36
      %42 = dma.hbm_to_vmem [thread:$0]  %s1, 16384, %s37, [#allocation6], 128, 128, 8
    $region9: #{tpu_custom_call.1} parent=1 // pred_fallthru
      _
    // Predicated region
    $region10: #{tpu_custom_call.1} parent=1 // pred_check
      _
    $region11: #{tpu_custom_call.1} parent=1 // pred_check_branch
      %44 = sbr.rel (0) target = $region13
    $region12: #{tpu_custom_call.1} parent=1 // pred_region
      _
    $region13: #{tpu_custom_call.1} parent=1 // pred_fallthru
      _
    // Predicated region
    $region14: #{tpu_custom_call.1} parent=1 // pred_check
      _
    $region15: #{tpu_custom_call.1} parent=1 // pred_check_branch
      %46 = sbr.rel (0) target = $region17
    $region16: #{tpu_custom_call.1} parent=1 // pred_region
      %s48 = ssub.s32 4096, 4096
      %49 = vsyncadd [#allocation6], %s48
      %s50 = sshll.u32 [#allocation7], 4
      %s51 = int_to_ptr.vmem [resolvable:$true] %s50
      %56 = dma.hbm_to_vmem [thread:$0]  %s3, 4096, %s51, [#allocation6], 128, 128, 8
    $region17: #{tpu_custom_call.1} parent=1 // pred_fallthru
      _
    // Predicated region
    $region18: #{tpu_custom_call.1} parent=1 // pred_check
      _
    $region19: #{tpu_custom_call.1} parent=1 // pred_check_branch
      %58 = sbr.rel (0) target = $region21
    $region20: #{tpu_custom_call.1} parent=1 // pred_region
      _
    $region21: #{tpu_custom_call.1} parent=1 // pred_fallthru
      _
    // Predicated region
    $region22: #{tpu_custom_call.1} parent=1 // pred_check
      _
    $region23: #{tpu_custom_call.1} parent=1 // pred_check_branch
      %60 = sbr.rel (0) target = $region25
    $region24: #{tpu_custom_call.1} parent=1 // pred_region
      %s62 = ssub.s32 4096, 4096
      %63 = vsyncadd [#allocation9], %s62
      %s64 = sshll.u32 [#allocation8], 4
      %s65 = int_to_ptr.vmem [resolvable:$true] %s64
      %70 = dma.hbm_to_vmem [thread:$0]  %s5, 4096, %s65, [#allocation9], 128, 128, 8
    $region25: #{tpu_custom_call.1} parent=1 // pred_fallthru
      _
    // Predicated region
    $region26: #{tpu_custom_call.1} parent=1 // pred_check
      _
    $region27: #{tpu_custom_call.1} parent=1 // pred_check_branch
      %72 = sbr.rel (0) target = $region29
    $region28: #{tpu_custom_call.1} parent=1 // pred_region
      _
    $region29: #{tpu_custom_call.1} parent=1 // pred_fallthru
      _
    // Predicated region
    $region30: #{tpu_custom_call.1} parent=1 // pred_check
      _
    $region31: #{tpu_custom_call.1} parent=1 // pred_check_branch
      %74 = sbr.rel (0) target = $region33
    $region32: #{tpu_custom_call.1} parent=1 // pred_region
      %s76 = ssub.s32 4096, 4096
      %77 = vsyncadd [#allocation9], %s76
      %s78 = sshll.u32 [#allocation10], 4
      %s79 = int_to_ptr.vmem [resolvable:$true] %s78
      %84 = dma.hbm_to_vmem [thread:$0]  %s7, 4096, %s79, [#allocation9], 128, 128, 8
    $region33: #{tpu_custom_call.1} parent=1 // pred_fallthru
      _
    // Predicated region
    $region34: #{tpu_custom_call.1} parent=1 // pred_check
      _
    $region35: #{tpu_custom_call.1} parent=1 // pred_check_branch
      %86 = sbr.rel (0) target = $region37
    $region36: #{tpu_custom_call.1} parent=1 // pred_region
      _
    $region37: #{tpu_custom_call.1} parent=1 // pred_fallthru
      _
    // Predicated region
    $region38: #{tpu_custom_call.1} parent=1 // pred_check
      _
    $region39: #{tpu_custom_call.1} parent=1 // pred_check_branch
      %88 = sbr.rel (0) target = $region41
    $region40: #{tpu_custom_call.1} parent=1 // pred_region
      %s90 = ssub.s32 2048, 2048
      %91 = vsyncadd [#allocation12], %s90
      %s92 = sshll.u32 [#allocation11], 4
      %s93 = int_to_ptr.vmem [resolvable:$true] %s92
      %98 = dma.hbm_to_vmem [thread:$0]  %s9, 2048, %s93, [#allocation12], 64, 64, 4
    $region41: #{tpu_custom_call.1} parent=1 // pred_fallthru
      _
    // Predicated region
    $region42: #{tpu_custom_call.1} parent=1 // pred_check
      _
    $region43: #{tpu_custom_call.1} parent=1 // pred_check_branch
      %100 = sbr.rel (0) target = $region45
    $region44: #{tpu_custom_call.1} parent=1 // pred_region
      _
    $region45: #{tpu_custom_call.1} parent=1 // pred_fallthru
      _
    // Predicated region
    $region46: #{tpu_custom_call.1} parent=1 // pred_check
      _
    $region47: #{tpu_custom_call.1} parent=1 // pred_check_branch
      %102 = sbr.rel (0) target = $region49
    $region48: #{tpu_custom_call.1} parent=1 // pred_region
      %103 = dma.done [#allocation3], 512
    $region49: #{tpu_custom_call.1} parent=1 // pred_fallthru
      _
    // Predicated region
    $region50: #{tpu_custom_call.1} parent=1 // pred_check
      _
    $region51: #{tpu_custom_call.1} parent=1 // pred_check_branch
      %105 = sbr.rel (0) target = $region53
    $region52: #{tpu_custom_call.1} parent=1 // pred_region
      %106 = dma.done [#allocation6], 16384
    $region53: #{tpu_custom_call.1} parent=1 // pred_fallthru
      _
    // Predicated region
    $region54: #{tpu_custom_call.1} parent=1 // pred_check
      _
    $region55: #{tpu_custom_call.1} parent=1 // pred_check_branch
      %108 = sbr.rel (0) target = $region57
    $region56: #{tpu_custom_call.1} parent=1 // pred_region
      %109 = dma.done [#allocation6], 4096
    $region57: #{tpu_custom_call.1} parent=1 // pred_fallthru
      _
    // Predicated region
    $region58: #{tpu_custom_call.1} parent=1 // pred_check
      _
    $region59: #{tpu_custom_call.1} parent=1 // pred_check_branch
      %111 = sbr.rel (0) target = $region61
    $region60: #{tpu_custom_call.1} parent=1 // pred_region
      %112 = dma.done [#allocation9], 4096
    $region61: #{tpu_custom_call.1} parent=1 // pred_fallthru
      _
    // Predicated region
    $region62: #{tpu_custom_call.1} parent=1 // pred_check
      _
    $region63: #{tpu_custom_call.1} parent=1 // pred_check_branch
      %114 = sbr.rel (0) target = $region65
    $region64: #{tpu_custom_call.1} parent=1 // pred_region
      %115 = dma.done [#allocation9], 4096
    $region65: #{tpu_custom_call.1} parent=1 // pred_fallthru
      _
    // Predicated region
    $region66: #{tpu_custom_call.1} parent=1 // pred_check
      _
    $region67: #{tpu_custom_call.1} parent=1 // pred_check_branch
      %117 = sbr.rel (0) target = $region69
    $region68: #{tpu_custom_call.1} parent=1 // pred_region
      %118 = dma.done [#allocation12], 2048
    $region69: #{tpu_custom_call.1} parent=1 // pred_fallthru
      _
    %v120 = vld [vmem:[#allocation2] sm:$0xff]
    %v121 = vld [vmem:[#allocation2 + $0x8] sm:$0xff]
    %v122 = vld [vmem:[#allocation2 + $0x10] sm:$0xff]
    %v123 = vld [vmem:[#allocation2 + $0x18] sm:$0xff]
    %v124 = vld [vmem:[#allocation5] sm:$0xff]
    %v125 = vld [vmem:[#allocation5 + $0x8] sm:$0xff]
    %v126 = vld [vmem:[#allocation5 + $0x10] sm:$0xff]
    %v127 = vld [vmem:[#allocation5 + $0x18] sm:$0xff]
    %v128 = vld [vmem:[#allocation5 + $0x20] sm:$0xff]
    %v129 = vld [vmem:[#allocation5 + $0x28] sm:$0xff]
    %v130 = vld [vmem:[#allocation5 + $0x30] sm:$0xff]
    %v131 = vld [vmem:[#allocation5 + $0x38] sm:$0xff]
    %v132 = vld [vmem:[#allocation5 + $0x40] sm:$0xff]
    %v133 = vld [vmem:[#allocation5 + $0x48] sm:$0xff]
    %v134 = vld [vmem:[#allocation5 + $0x50] sm:$0xff]
    %v135 = vld [vmem:[#allocation5 + $0x58] sm:$0xff]
    %v136 = vld [vmem:[#allocation5 + $0x60] sm:$0xff]
    %v137 = vld [vmem:[#allocation5 + $0x68] sm:$0xff]
    %v138 = vld [vmem:[#allocation5 + $0x70] sm:$0xff]
    %v139 = vld [vmem:[#allocation5 + $0x78] sm:$0xff]
    %v140 = vld [vmem:[#allocation5 + $0x80] sm:$0xff]
    %v141 = vld [vmem:[#allocation5 + $0x88] sm:$0xff]
    %v142 = vld [vmem:[#allocation5 + $0x90] sm:$0xff]
    %v143 = vld [vmem:[#allocation5 + $0x98] sm:$0xff]
    %v144 = vld [vmem:[#allocation5 + $0xa0] sm:$0xff]
    %v145 = vld [vmem:[#allocation5 + $0xa8] sm:$0xff]
    %v146 = vld [vmem:[#allocation5 + $0xb0] sm:$0xff]
    %v147 = vld [vmem:[#allocation5 + $0xb8] sm:$0xff]
    %v148 = vld [vmem:[#allocation5 + $0xc0] sm:$0xff]
    %v149 = vld [vmem:[#allocation5 + $0xc8] sm:$0xff]
    %v150 = vld [vmem:[#allocation5 + $0xd0] sm:$0xff]
    %v151 = vld [vmem:[#allocation5 + $0xd8] sm:$0xff]
    %v152 = vld [vmem:[#allocation5 + $0xe0] sm:$0xff]
    %v153 = vld [vmem:[#allocation5 + $0xe8] sm:$0xff]
    %v154 = vld [vmem:[#allocation5 + $0xf0] sm:$0xff]
    %v155 = vld [vmem:[#allocation5 + $0xf8] sm:$0xff]
    %v156 = vld [vmem:[#allocation5 + $0x100] sm:$0xff]
    %v157 = vld [vmem:[#allocation5 + $0x108] sm:$0xff]
    %v158 = vld [vmem:[#allocation5 + $0x110] sm:$0xff]
    %v159 = vld [vmem:[#allocation5 + $0x118] sm:$0xff]
    %v160 = vld [vmem:[#allocation5 + $0x120] sm:$0xff]
    %v161 = vld [vmem:[#allocation5 + $0x128] sm:$0xff]
    %v162 = vld [vmem:[#allocation5 + $0x130] sm:$0xff]
    %v163 = vld [vmem:[#allocation5 + $0x138] sm:$0xff]
    %v164 = vld [vmem:[#allocation5 + $0x140] sm:$0xff]
    %v165 = vld [vmem:[#allocation5 + $0x148] sm:$0xff]
    %v166 = vld [vmem:[#allocation5 + $0x150] sm:$0xff]
    %v167 = vld [vmem:[#allocation5 + $0x158] sm:$0xff]
    %v168 = vld [vmem:[#allocation5 + $0x160] sm:$0xff]
    %v169 = vld [vmem:[#allocation5 + $0x168] sm:$0xff]
    %v170 = vld [vmem:[#allocation5 + $0x170] sm:$0xff]
    %v171 = vld [vmem:[#allocation5 + $0x178] sm:$0xff]
    %v172 = vld [vmem:[#allocation5 + $0x180] sm:$0xff]
    %v173 = vld [vmem:[#allocation5 + $0x188] sm:$0xff]
    %v174 = vld [vmem:[#allocation5 + $0x190] sm:$0xff]
    %v175 = vld [vmem:[#allocation5 + $0x198] sm:$0xff]
    %v176 = vld [vmem:[#allocation5 + $0x1a0] sm:$0xff]
    %v177 = vld [vmem:[#allocation5 + $0x1a8] sm:$0xff]
    %v178 = vld [vmem:[#allocation5 + $0x1b0] sm:$0xff]
    %v179 = vld [vmem:[#allocation5 + $0x1b8] sm:$0xff]
    %v180 = vld [vmem:[#allocation5 + $0x1c0] sm:$0xff]
    %v181 = vld [vmem:[#allocation5 + $0x1c8] sm:$0xff]
    %v182 = vld [vmem:[#allocation5 + $0x1d0] sm:$0xff]
    %v183 = vld [vmem:[#allocation5 + $0x1d8] sm:$0xff]
    %v184 = vld [vmem:[#allocation5 + $0x1e0] sm:$0xff]
    %v185 = vld [vmem:[#allocation5 + $0x1e8] sm:$0xff]
    %v186 = vld [vmem:[#allocation5 + $0x1f0] sm:$0xff]
    %v187 = vld [vmem:[#allocation5 + $0x1f8] sm:$0xff]
    %v188 = vld [vmem:[#allocation5 + $0x200] sm:$0xff]
    %v189 = vld [vmem:[#allocation5 + $0x208] sm:$0xff]
    %v190 = vld [vmem:[#allocation5 + $0x210] sm:$0xff]
    %v191 = vld [vmem:[#allocation5 + $0x218] sm:$0xff]
    %v192 = vld [vmem:[#allocation5 + $0x220] sm:$0xff]
    %v193 = vld [vmem:[#allocation5 + $0x228] sm:$0xff]
    %v194 = vld [vmem:[#allocation5 + $0x230] sm:$0xff]
    %v195 = vld [vmem:[#allocation5 + $0x238] sm:$0xff]
    %v196 = vld [vmem:[#allocation5 + $0x240] sm:$0xff]
    %v197 = vld [vmem:[#allocation5 + $0x248] sm:$0xff]
    %v198 = vld [vmem:[#allocation5 + $0x250] sm:$0xff]
    %v199 = vld [vmem:[#allocation5 + $0x258] sm:$0xff]
    %v200 = vld [vmem:[#allocation5 + $0x260] sm:$0xff]
    %v201 = vld [vmem:[#allocation5 + $0x268] sm:$0xff]
    %v202 = vld [vmem:[#allocation5 + $0x270] sm:$0xff]
    %v203 = vld [vmem:[#allocation5 + $0x278] sm:$0xff]
    %v204 = vld [vmem:[#allocation5 + $0x280] sm:$0xff]
    %v205 = vld [vmem:[#allocation5 + $0x288] sm:$0xff]
    %v206 = vld [vmem:[#allocation5 + $0x290] sm:$0xff]
    %v207 = vld [vmem:[#allocation5 + $0x298] sm:$0xff]
    %v208 = vld [vmem:[#allocation5 + $0x2a0] sm:$0xff]
    %v209 = vld [vmem:[#allocation5 + $0x2a8] sm:$0xff]
    %v210 = vld [vmem:[#allocation5 + $0x2b0] sm:$0xff]
    %v211 = vld [vmem:[#allocation5 + $0x2b8] sm:$0xff]
    %v212 = vld [vmem:[#allocation5 + $0x2c0] sm:$0xff]
    %v213 = vld [vmem:[#allocation5 + $0x2c8] sm:$0xff]
    %v214 = vld [vmem:[#allocation5 + $0x2d0] sm:$0xff]
    %v215 = vld [vmem:[#allocation5 + $0x2d8] sm:$0xff]
    %v216 = vld [vmem:[#allocation5 + $0x2e0] sm:$0xff]
    %v217 = vld [vmem:[#allocation5 + $0x2e8] sm:$0xff]
    %v218 = vld [vmem:[#allocation5 + $0x2f0] sm:$0xff]
    %v219 = vld [vmem:[#allocation5 + $0x2f8] sm:$0xff]
    %v220 = vld [vmem:[#allocation5 + $0x300] sm:$0xff]
    %v221 = vld [vmem:[#allocation5 + $0x308] sm:$0xff]
    %v222 = vld [vmem:[#allocation5 + $0x310] sm:$0xff]
    %v223 = vld [vmem:[#allocation5 + $0x318] sm:$0xff]
    %v224 = vld [vmem:[#allocation5 + $0x320] sm:$0xff]
    %v225 = vld [vmem:[#allocation5 + $0x328] sm:$0xff]
    %v226 = vld [vmem:[#allocation5 + $0x330] sm:$0xff]
    %v227 = vld [vmem:[#allocation5 + $0x338] sm:$0xff]
    %v228 = vld [vmem:[#allocation5 + $0x340] sm:$0xff]
    %v229 = vld [vmem:[#allocation5 + $0x348] sm:$0xff]
    %v230 = vld [vmem:[#allocation5 + $0x350] sm:$0xff]
    %v231 = vld [vmem:[#allocation5 + $0x358] sm:$0xff]
    %v232 = vld [vmem:[#allocation5 + $0x360] sm:$0xff]
    %v233 = vld [vmem:[#allocation5 + $0x368] sm:$0xff]
    %v234 = vld [vmem:[#allocation5 + $0x370] sm:$0xff]
    %v235 = vld [vmem:[#allocation5 + $0x378] sm:$0xff]
    %v236 = vld [vmem:[#allocation5 + $0x380] sm:$0xff]
    %v237 = vld [vmem:[#allocation5 + $0x388] sm:$0xff]
    %v238 = vld [vmem:[#allocation5 + $0x390] sm:$0xff]
    %v239 = vld [vmem:[#allocation5 + $0x398] sm:$0xff]
    %v240 = vld [vmem:[#allocation5 + $0x3a0] sm:$0xff]
    %v241 = vld [vmem:[#allocation5 + $0x3a8] sm:$0xff]
    %v242 = vld [vmem:[#allocation5 + $0x3b0] sm:$0xff]
    %v243 = vld [vmem:[#allocation5 + $0x3b8] sm:$0xff]
    %v244 = vld [vmem:[#allocation5 + $0x3c0] sm:$0xff]
    %v245 = vld [vmem:[#allocation5 + $0x3c8] sm:$0xff]
    %v246 = vld [vmem:[#allocation5 + $0x3d0] sm:$0xff]
    %v247 = vld [vmem:[#allocation5 + $0x3d8] sm:$0xff]
    %v248 = vld [vmem:[#allocation5 + $0x3e0] sm:$0xff]
    %v249 = vld [vmem:[#allocation5 + $0x3e8] sm:$0xff]
    %v250 = vld [vmem:[#allocation5 + $0x3f0] sm:$0xff]
    %v251 = vld [vmem:[#allocation5 + $0x3f8] sm:$0xff]
    %v252 = vld [vmem:[%s2] sm:$0x3]
    %v254 = vlaneseq
    %v255 = vshrl.u32 %v254, 7
    %v256 = vsub.s32 0, %v255
    %v257 = vrot.slane %v252, %v256
    %v258 = vlaneseq
    %v259 = vshrl.u32 %v258, 7
    %v260 = vsub.s32 1, %v259
    %v261 = vrot.slane %v252, %v260
    %v268 = vunpack.c.l.b16 %v120
    %v269 = vunpack.c.h.b16 %v120
    %v270 = vunpack.c.l.b16 %v121
    %v271 = vunpack.c.h.b16 %v121
    %v272 = vunpack.c.l.b16 %v122
    %v273 = vunpack.c.h.b16 %v122
    %v274 = vunpack.c.l.b16 %v123
    %v275 = vunpack.c.h.b16 %v123
    %v276 = vpack.c.b16 %v268, %v268
    %v277 = vpack.c.b16 %v269, %v269
    %v278 = vpack.c.b16 %v270, %v270
    %v279 = vpack.c.b16 %v271, %v271
    %v280 = vpack.c.b16 %v272, %v272
    %v281 = vpack.c.b16 %v273, %v273
    %v282 = vpack.c.b16 %v274, %v274
    %v283 = vpack.c.b16 %v275, %v275
    %v420 = vunpack.c.l.b16 %v124
    %v421 = vunpack.c.h.b16 %v124
    %v422 = vunpack.c.l.b16 %v125
    %v423 = vunpack.c.h.b16 %v125
    %v424 = vunpack.c.l.b16 %v126
    %v425 = vunpack.c.h.b16 %v126
    %v426 = vunpack.c.l.b16 %v127
    %v427 = vunpack.c.h.b16 %v127
    %v428 = vunpack.c.l.b16 %v128
    %v429 = vunpack.c.h.b16 %v128
    %v430 = vunpack.c.l.b16 %v129
    %v431 = vunpack.c.h.b16 %v129
    %v432 = vunpack.c.l.b16 %v130
    %v433 = vunpack.c.h.b16 %v130
    %v434 = vunpack.c.l.b16 %v131
    %v435 = vunpack.c.h.b16 %v131
    %v436 = vunpack.c.l.b16 %v132
    %v437 = vunpack.c.h.b16 %v132
    %v438 = vunpack.c.l.b16 %v133
    %v439 = vunpack.c.h.b16 %v133
    %v440 = vunpack.c.l.b16 %v134
    %v441 = vunpack.c.h.b16 %v134
    %v442 = vunpack.c.l.b16 %v135
    %v443 = vunpack.c.h.b16 %v135
    %v444 = vunpack.c.l.b16 %v136
    %v445 = vunpack.c.h.b16 %v136
    %v446 = vunpack.c.l.b16 %v137
    %v447 = vunpack.c.h.b16 %v137
    %v448 = vunpack.c.l.b16 %v138
    %v449 = vunpack.c.h.b16 %v138
    %v450 = vunpack.c.l.b16 %v139
    %v451 = vunpack.c.h.b16 %v139
    %v452 = vunpack.c.l.b16 %v140
    %v453 = vunpack.c.h.b16 %v140
    %v454 = vunpack.c.l.b16 %v141
    %v455 = vunpack.c.h.b16 %v141
    %v456 = vunpack.c.l.b16 %v142
    %v457 = vunpack.c.h.b16 %v142
    %v458 = vunpack.c.l.b16 %v143
    %v459 = vunpack.c.h.b16 %v143
    %v460 = vunpack.c.l.b16 %v144
    %v461 = vunpack.c.h.b16 %v144
    %v462 = vunpack.c.l.b16 %v145
    %v463 = vunpack.c.h.b16 %v145
    %v464 = vunpack.c.l.b16 %v146
    %v465 = vunpack.c.h.b16 %v146
    %v466 = vunpack.c.l.b16 %v147
    %v467 = vunpack.c.h.b16 %v147
    %v468 = vunpack.c.l.b16 %v148
    %v469 = vunpack.c.h.b16 %v148
    %v470 = vunpack.c.l.b16 %v149
    %v471 = vunpack.c.h.b16 %v149
    %v472 = vunpack.c.l.b16 %v150
    %v473 = vunpack.c.h.b16 %v150
    %v474 = vunpack.c.l.b16 %v151
    %v475 = vunpack.c.h.b16 %v151
    %v476 = vunpack.c.l.b16 %v152
    %v477 = vunpack.c.h.b16 %v152
    %v478 = vunpack.c.l.b16 %v153
    %v479 = vunpack.c.h.b16 %v153
    %v480 = vunpack.c.l.b16 %v154
    %v481 = vunpack.c.h.b16 %v154
    %v482 = vunpack.c.l.b16 %v155
    %v483 = vunpack.c.h.b16 %v155
    %v484 = vunpack.c.l.b16 %v156
    %v485 = vunpack.c.h.b16 %v156
    %v486 = vunpack.c.l.b16 %v157
    %v487 = vunpack.c.h.b16 %v157
    %v488 = vunpack.c.l.b16 %v158
    %v489 = vunpack.c.h.b16 %v158
    %v490 = vunpack.c.l.b16 %v159
    %v491 = vunpack.c.h.b16 %v159
    %v492 = vunpack.c.l.b16 %v160
    %v493 = vunpack.c.h.b16 %v160
    %v494 = vunpack.c.l.b16 %v161
    %v495 = vunpack.c.h.b16 %v161
    %v496 = vunpack.c.l.b16 %v162
    %v497 = vunpack.c.h.b16 %v162
    %v498 = vunpack.c.l.b16 %v163
    %v499 = vunpack.c.h.b16 %v163
    %v500 = vunpack.c.l.b16 %v164
    %v501 = vunpack.c.h.b16 %v164
    %v502 = vunpack.c.l.b16 %v165
    %v503 = vunpack.c.h.b16 %v165
    %v504 = vunpack.c.l.b16 %v166
    %v505 = vunpack.c.h.b16 %v166
    %v506 = vunpack.c.l.b16 %v167
    %v507 = vunpack.c.h.b16 %v167
    %v508 = vunpack.c.l.b16 %v168
    %v509 = vunpack.c.h.b16 %v168
    %v510 = vunpack.c.l.b16 %v169
    %v511 = vunpack.c.h.b16 %v169
    %v512 = vunpack.c.l.b16 %v170
    %v513 = vunpack.c.h.b16 %v170
    %v514 = vunpack.c.l.b16 %v171
    %v515 = vunpack.c.h.b16 %v171
    %v516 = vunpack.c.l.b16 %v172
    %v517 = vunpack.c.h.b16 %v172
    %v518 = vunpack.c.l.b16 %v173
    %v519 = vunpack.c.h.b16 %v173
    %v520 = vunpack.c.l.b16 %v174
    %v521 = vunpack.c.h.b16 %v174
    %v522 = vunpack.c.l.b16 %v175
    %v523 = vunpack.c.h.b16 %v175
    %v524 = vunpack.c.l.b16 %v176
    %v525 = vunpack.c.h.b16 %v176
    %v526 = vunpack.c.l.b16 %v177
    %v527 = vunpack.c.h.b16 %v177
    %v528 = vunpack.c.l.b16 %v178
    %v529 = vunpack.c.h.b16 %v178
    %v530 = vunpack.c.l.b16 %v179
    %v531 = vunpack.c.h.b16 %v179
    %v532 = vunpack.c.l.b16 %v180
    %v533 = vunpack.c.h.b16 %v180
    %v534 = vunpack.c.l.b16 %v181
    %v535 = vunpack.c.h.b16 %v181
    %v536 = vunpack.c.l.b16 %v182
    %v537 = vunpack.c.h.b16 %v182
    %v538 = vunpack.c.l.b16 %v183
    %v539 = vunpack.c.h.b16 %v183
    %v540 = vunpack.c.l.b16 %v184
    %v541 = vunpack.c.h.b16 %v184
    %v542 = vunpack.c.l.b16 %v185
    %v543 = vunpack.c.h.b16 %v185
    %v544 = vunpack.c.l.b16 %v186
    %v545 = vunpack.c.h.b16 %v186
    %v546 = vunpack.c.l.b16 %v187
    %v547 = vunpack.c.h.b16 %v187
    %v548 = vunpack.c.l.b16 %v188
    %v549 = vunpack.c.h.b16 %v188
    %v550 = vunpack.c.l.b16 %v189
    %v551 = vunpack.c.h.b16 %v189
    %v552 = vunpack.c.l.b16 %v190
    %v553 = vunpack.c.h.b16 %v190
    %v554 = vunpack.c.l.b16 %v191
    %v555 = vunpack.c.h.b16 %v191
    %v556 = vunpack.c.l.b16 %v192
    %v557 = vunpack.c.h.b16 %v192
    %v558 = vunpack.c.l.b16 %v193
    %v559 = vunpack.c.h.b16 %v193
    %v560 = vunpack.c.l.b16 %v194
    %v561 = vunpack.c.h.b16 %v194
    %v562 = vunpack.c.l.b16 %v195
    %v563 = vunpack.c.h.b16 %v195
    %v564 = vunpack.c.l.b16 %v196
    %v565 = vunpack.c.h.b16 %v196
    %v566 = vunpack.c.l.b16 %v197
    %v567 = vunpack.c.h.b16 %v197
    %v568 = vunpack.c.l.b16 %v198
    %v569 = vunpack.c.h.b16 %v198
    %v570 = vunpack.c.l.b16 %v199
    %v571 = vunpack.c.h.b16 %v199
    %v572 = vunpack.c.l.b16 %v200
    %v573 = vunpack.c.h.b16 %v200
    %v574 = vunpack.c.l.b16 %v201
    %v575 = vunpack.c.h.b16 %v201
    %v576 = vunpack.c.l.b16 %v202
    %v577 = vunpack.c.h.b16 %v202
    %v578 = vunpack.c.l.b16 %v203
    %v579 = vunpack.c.h.b16 %v203
    %v580 = vunpack.c.l.b16 %v204
    %v581 = vunpack.c.h.b16 %v204
    %v582 = vunpack.c.l.b16 %v205
    %v583 = vunpack.c.h.b16 %v205
    %v584 = vunpack.c.l.b16 %v206
    %v585 = vunpack.c.h.b16 %v206
    %v586 = vunpack.c.l.b16 %v207
    %v587 = vunpack.c.h.b16 %v207
    %v588 = vunpack.c.l.b16 %v208
    %v589 = vunpack.c.h.b16 %v208
    %v590 = vunpack.c.l.b16 %v209
    %v591 = vunpack.c.h.b16 %v209
    %v592 = vunpack.c.l.b16 %v210
    %v593 = vunpack.c.h.b16 %v210
    %v594 = vunpack.c.l.b16 %v211
    %v595 = vunpack.c.h.b16 %v211
    %v596 = vunpack.c.l.b16 %v212
    %v597 = vunpack.c.h.b16 %v212
    %v598 = vunpack.c.l.b16 %v213
    %v599 = vunpack.c.h.b16 %v213
    %v600 = vunpack.c.l.b16 %v214
    %v601 = vunpack.c.h.b16 %v214
    %v602 = vunpack.c.l.b16 %v215
    %v603 = vunpack.c.h.b16 %v215
    %v604 = vunpack.c.l.b16 %v216
    %v605 = vunpack.c.h.b16 %v216
    %v606 = vunpack.c.l.b16 %v217
    %v607 = vunpack.c.h.b16 %v217
    %v608 = vunpack.c.l.b16 %v218
    %v609 = vunpack.c.h.b16 %v218
    %v610 = vunpack.c.l.b16 %v219
    %v611 = vunpack.c.h.b16 %v219
    %v612 = vunpack.c.l.b16 %v220
    %v613 = vunpack.c.h.b16 %v220
    %v614 = vunpack.c.l.b16 %v221
    %v615 = vunpack.c.h.b16 %v221
    %v616 = vunpack.c.l.b16 %v222
    %v617 = vunpack.c.h.b16 %v222
    %v618 = vunpack.c.l.b16 %v223
    %v619 = vunpack.c.h.b16 %v223
    %v620 = vunpack.c.l.b16 %v224
    %v621 = vunpack.c.h.b16 %v224
    %v622 = vunpack.c.l.b16 %v225
    %v623 = vunpack.c.h.b16 %v225
    %v624 = vunpack.c.l.b16 %v226
    %v625 = vunpack.c.h.b16 %v226
    %v626 = vunpack.c.l.b16 %v227
    %v627 = vunpack.c.h.b16 %v227
    %v628 = vunpack.c.l.b16 %v228
    %v629 = vunpack.c.h.b16 %v228
    %v630 = vunpack.c.l.b16 %v229
    %v631 = vunpack.c.h.b16 %v229
    %v632 = vunpack.c.l.b16 %v230
    %v633 = vunpack.c.h.b16 %v230
    %v634 = vunpack.c.l.b16 %v231
    %v635 = vunpack.c.h.b16 %v231
    %v636 = vunpack.c.l.b16 %v232
    %v637 = vunpack.c.h.b16 %v232
    %v638 = vunpack.c.l.b16 %v233
    %v639 = vunpack.c.h.b16 %v233
    %v640 = vunpack.c.l.b16 %v234
    %v641 = vunpack.c.h.b16 %v234
    %v642 = vunpack.c.l.b16 %v235
    %v643 = vunpack.c.h.b16 %v235
    %v644 = vunpack.c.l.b16 %v236
    %v645 = vunpack.c.h.b16 %v236
    %v646 = vunpack.c.l.b16 %v237
    %v647 = vunpack.c.h.b16 %v237
    %v648 = vunpack.c.l.b16 %v238
    %v649 = vunpack.c.h.b16 %v238
    %v650 = vunpack.c.l.b16 %v239
    %v651 = vunpack.c.h.b16 %v239
    %v652 = vunpack.c.l.b16 %v240
    %v653 = vunpack.c.h.b16 %v240
    %v654 = vunpack.c.l.b16 %v241
    %v655 = vunpack.c.h.b16 %v241
    %v656 = vunpack.c.l.b16 %v242
    %v657 = vunpack.c.h.b16 %v242
    %v658 = vunpack.c.l.b16 %v243
    %v659 = vunpack.c.h.b16 %v243
    %v660 = vunpack.c.l.b16 %v244
    %v661 = vunpack.c.h.b16 %v244
    %v662 = vunpack.c.l.b16 %v245
    %v663 = vunpack.c.h.b16 %v245
    %v664 = vunpack.c.l.b16 %v246
    %v665 = vunpack.c.h.b16 %v246
    %v666 = vunpack.c.l.b16 %v247
    %v667 = vunpack.c.h.b16 %v247
    %v668 = vunpack.c.l.b16 %v248
    %v669 = vunpack.c.h.b16 %v248
    %v670 = vunpack.c.l.b16 %v249
    %v671 = vunpack.c.h.b16 %v249
    %v672 = vunpack.c.l.b16 %v250
    %v673 = vunpack.c.h.b16 %v250
    %v674 = vunpack.c.l.b16 %v251
    %v675 = vunpack.c.h.b16 %v251
    %v676 = vpack.c.b16 %v422, %v420
    %v677 = vpack.c.b16 %v423, %v421
    %v678 = vpack.c.b16 %v426, %v424
    %v679 = vpack.c.b16 %v427, %v425
    %v680 = vpack.c.b16 %v430, %v428
    %v681 = vpack.c.b16 %v431, %v429
    %v682 = vpack.c.b16 %v434, %v432
    %v683 = vpack.c.b16 %v435, %v433
    %v684 = vpack.c.b16 %v438, %v436
    %v685 = vpack.c.b16 %v439, %v437
    %v686 = vpack.c.b16 %v442, %v440
    %v687 = vpack.c.b16 %v443, %v441
    %v688 = vpack.c.b16 %v446, %v444
    %v689 = vpack.c.b16 %v447, %v445
    %v690 = vpack.c.b16 %v450, %v448
    %v691 = vpack.c.b16 %v451, %v449
    %v692 = vpack.c.b16 %v454, %v452
    %v693 = vpack.c.b16 %v455, %v453
    %v694 = vpack.c.b16 %v458, %v456
    %v695 = vpack.c.b16 %v459, %v457
    %v696 = vpack.c.b16 %v462, %v460
    %v697 = vpack.c.b16 %v463, %v461
    %v698 = vpack.c.b16 %v466, %v464
    %v699 = vpack.c.b16 %v467, %v465
    %v700 = vpack.c.b16 %v470, %v468
    %v701 = vpack.c.b16 %v471, %v469
    %v702 = vpack.c.b16 %v474, %v472
    %v703 = vpack.c.b16 %v475, %v473
    %v704 = vpack.c.b16 %v478, %v476
    %v705 = vpack.c.b16 %v479, %v477
    %v706 = vpack.c.b16 %v482, %v480
    %v707 = vpack.c.b16 %v483, %v481
    %v708 = vpack.c.b16 %v486, %v484
    %v709 = vpack.c.b16 %v487, %v485
    %v710 = vpack.c.b16 %v490, %v488
    %v711 = vpack.c.b16 %v491, %v489
    %v712 = vpack.c.b16 %v494, %v492
    %v713 = vpack.c.b16 %v495, %v493
    %v714 = vpack.c.b16 %v498, %v496
    %v715 = vpack.c.b16 %v499, %v497
    %v716 = vpack.c.b16 %v502, %v500
    %v717 = vpack.c.b16 %v503, %v501
    %v718 = vpack.c.b16 %v506, %v504
    %v719 = vpack.c.b16 %v507, %v505
    %v720 = vpack.c.b16 %v510, %v508
    %v721 = vpack.c.b16 %v511, %v509
    %v722 = vpack.c.b16 %v514, %v512
    %v723 = vpack.c.b16 %v515, %v513
    %v724 = vpack.c.b16 %v518, %v516
    %v725 = vpack.c.b16 %v519, %v517
    %v726 = vpack.c.b16 %v522, %v520
    %v727 = vpack.c.b16 %v523, %v521
    %v728 = vpack.c.b16 %v526, %v524
    %v729 = vpack.c.b16 %v527, %v525
    %v730 = vpack.c.b16 %v530, %v528
    %v731 = vpack.c.b16 %v531, %v529
    %v732 = vpack.c.b16 %v534, %v532
    %v733 = vpack.c.b16 %v535, %v533
    %v734 = vpack.c.b16 %v538, %v536
    %v735 = vpack.c.b16 %v539, %v537
    %v736 = vpack.c.b16 %v542, %v540
    %v737 = vpack.c.b16 %v543, %v541
    %v738 = vpack.c.b16 %v546, %v544
    %v739 = vpack.c.b16 %v547, %v545
    %v740 = vpack.c.b16 %v550, %v548
    %v741 = vpack.c.b16 %v551, %v549
    %v742 = vpack.c.b16 %v554, %v552
    %v743 = vpack.c.b16 %v555, %v553
    %v744 = vpack.c.b16 %v558, %v556
    %v745 = vpack.c.b16 %v559, %v557
    %v746 = vpack.c.b16 %v562, %v560
    %v747 = vpack.c.b16 %v563, %v561
    %v748 = vpack.c.b16 %v566, %v564
    %v749 = vpack.c.b16 %v567, %v565
    %v750 = vpack.c.b16 %v570, %v568
    %v751 = vpack.c.b16 %v571, %v569
    %v752 = vpack.c.b16 %v574, %v572
    %v753 = vpack.c.b16 %v575, %v573
    %v754 = vpack.c.b16 %v578, %v576
    %v755 = vpack.c.b16 %v579, %v577
    %v756 = vpack.c.b16 %v582, %v580
    %v757 = vpack.c.b16 %v583, %v581
    %v758 = vpack.c.b16 %v586, %v584
    %v759 = vpack.c.b16 %v587, %v585
    %v760 = vpack.c.b16 %v590, %v588
    %v761 = vpack.c.b16 %v591, %v589
    %v762 = vpack.c.b16 %v594, %v592
    %v763 = vpack.c.b16 %v595, %v593
    %v764 = vpack.c.b16 %v598, %v596
    %v765 = vpack.c.b16 %v599, %v597
    %v766 = vpack.c.b16 %v602, %v600
    %v767 = vpack.c.b16 %v603, %v601
    %v768 = vpack.c.b16 %v606, %v604
    %v769 = vpack.c.b16 %v607, %v605
    %v770 = vpack.c.b16 %v610, %v608
    %v771 = vpack.c.b16 %v611, %v609
    %v772 = vpack.c.b16 %v614, %v612
    %v773 = vpack.c.b16 %v615, %v613
    %v774 = vpack.c.b16 %v618, %v616
    %v775 = vpack.c.b16 %v619, %v617
    %v776 = vpack.c.b16 %v622, %v620
    %v777 = vpack.c.b16 %v623, %v621
    %v778 = vpack.c.b16 %v626, %v624
    %v779 = vpack.c.b16 %v627, %v625
    %v780 = vpack.c.b16 %v630, %v628
    %v781 = vpack.c.b16 %v631, %v629
    %v782 = vpack.c.b16 %v634, %v632
    %v783 = vpack.c.b16 %v635, %v633
    %v784 = vpack.c.b16 %v638, %v636
    %v785 = vpack.c.b16 %v639, %v637
    %v786 = vpack.c.b16 %v642, %v640
    %v787 = vpack.c.b16 %v643, %v641
    %v788 = vpack.c.b16 %v646, %v644
    %v789 = vpack.c.b16 %v647, %v645
    %v790 = vpack.c.b16 %v650, %v648
    %v791 = vpack.c.b16 %v651, %v649
    %v792 = vpack.c.b16 %v654, %v652
    %v793 = vpack.c.b16 %v655, %v653
    %v794 = vpack.c.b16 %v658, %v656
    %v795 = vpack.c.b16 %v659, %v657
    %v796 = vpack.c.b16 %v662, %v660
    %v797 = vpack.c.b16 %v663, %v661
    %v798 = vpack.c.b16 %v666, %v664
    %v799 = vpack.c.b16 %v667, %v665
    %v800 = vpack.c.b16 %v670, %v668
    %v801 = vpack.c.b16 %v671, %v669
    %v802 = vpack.c.b16 %v674, %v672
    %v803 = vpack.c.b16 %v675, %v673
    %932 = vmatprep.subr.bf16.mxu0 %v677
    %933 = vmatpush1.bf16.msra.mxu0 %v676
    %934 = vmatprep.subr.bf16.mxu0 %v679
    %935 = vmatpush1.bf16.msra.mxu0 %v678
    %936 = vmatprep.subr.bf16.mxu0 %v681
    %937 = vmatpush1.bf16.msra.mxu0 %v680
    %938 = vmatprep.subr.bf16.mxu0 %v683
    %939 = vmatpush1.bf16.msra.mxu0 %v682
    %940 = vmatprep.subr.bf16.mxu0 %v685
    %941 = vmatpush1.bf16.msra.mxu0 %v684
    %942 = vmatprep.subr.bf16.mxu0 %v687
    %943 = vmatpush1.bf16.msra.mxu0 %v686
    %944 = vmatprep.subr.bf16.mxu0 %v689
    %945 = vmatpush1.bf16.msra.mxu0 %v688
    %946 = vmatprep.subr.bf16.mxu0 %v691
    %947 = vmatpush1.bf16.msra.mxu0 %v690
    %948 = vmatprep.subr.bf16.mxu0 %v693
    %949 = vmatpush1.bf16.msra.mxu0 %v692
    %950 = vmatprep.subr.bf16.mxu0 %v695
    %951 = vmatpush1.bf16.msra.mxu0 %v694
    %952 = vmatprep.subr.bf16.mxu0 %v697
    %953 = vmatpush1.bf16.msra.mxu0 %v696
    %954 = vmatprep.subr.bf16.mxu0 %v699
    %955 = vmatpush1.bf16.msra.mxu0 %v698
    %956 = vmatprep.subr.bf16.mxu0 %v701
    %957 = vmatpush1.bf16.msra.mxu0 %v700
    %958 = vmatprep.subr.bf16.mxu0 %v703
    %959 = vmatpush1.bf16.msra.mxu0 %v702
    %960 = vmatprep.subr.bf16.mxu0 %v705
    %961 = vmatpush1.bf16.msra.mxu0 %v704
    %962 = vmatprep.subr.bf16.mxu0 %v707
    %963 = vmatpush1.bf16.msra.mxu0 %v706
    %964 = vmatprep.mubr.bf16.mxu0 %v277
    %965 = vmatmul.mubr.bf16.gmra.mrb[0].mxu0 %v276
    %v966 = vpop.f32.mrb[0].mxu0
    %v967 = vadd.f32 %v257, %v966
    %v968 = vpop.f32.mrb[0].mxu0
    %v969 = vadd.f32 %v261, %v968
    %v970 = vpop.f32.mrb[0].mxu0
    %v971 = vpop.f32.mrb[0].mxu0
    %972 = vdwg.mxu0
    %973 = vmatprep.subr.bf16.mxu0 %v709
    %974 = vmatpush1.bf16.msra.mxu0 %v708
    %975 = vmatprep.subr.bf16.mxu0 %v711
    %976 = vmatpush1.bf16.msra.mxu0 %v710
    %977 = vmatprep.subr.bf16.mxu0 %v713
    %978 = vmatpush1.bf16.msra.mxu0 %v712
    %979 = vmatprep.subr.bf16.mxu0 %v715
    %980 = vmatpush1.bf16.msra.mxu0 %v714
    %981 = vmatprep.subr.bf16.mxu0 %v717
    %982 = vmatpush1.bf16.msra.mxu0 %v716
    %983 = vmatprep.subr.bf16.mxu0 %v719
    %984 = vmatpush1.bf16.msra.mxu0 %v718
    %985 = vmatprep.subr.bf16.mxu0 %v721
    %986 = vmatpush1.bf16.msra.mxu0 %v720
    %987 = vmatprep.subr.bf16.mxu0 %v723
    %988 = vmatpush1.bf16.msra.mxu0 %v722
    %989 = vmatprep.subr.bf16.mxu0 %v725
    %990 = vmatpush1.bf16.msra.mxu0 %v724
    %991 = vmatprep.subr.bf16.mxu0 %v727
    %992 = vmatpush1.bf16.msra.mxu0 %v726
    %993 = vmatprep.subr.bf16.mxu0 %v729
    %994 = vmatpush1.bf16.msra.mxu0 %v728
    %995 = vmatprep.subr.bf16.mxu0 %v731
    %996 = vmatpush1.bf16.msra.mxu0 %v730
    %997 = vmatprep.subr.bf16.mxu0 %v733
    %998 = vmatpush1.bf16.msra.mxu0 %v732
    %999 = vmatprep.subr.bf16.mxu0 %v735
    %1000 = vmatpush1.bf16.msra.mxu0 %v734
    %1001 = vmatprep.subr.bf16.mxu0 %v737
    %1002 = vmatpush1.bf16.msra.mxu0 %v736
    %1003 = vmatprep.subr.bf16.mxu0 %v739
    %1004 = vmatpush1.bf16.msra.mxu0 %v738
    %1005 = vmatprep.mubr.bf16.mxu0 %v279
    %1006 = vmatmul.mubr.bf16.gmra.mrb[0].mxu0 %v278
    %v1007 = vpop.f32.mrb[0].mxu0
    %v1008 = vadd.f32 %v967, %v1007
    %v1009 = vpop.f32.mrb[0].mxu0
    %v1010 = vadd.f32 %v969, %v1009
    %v1011 = vpop.f32.mrb[0].mxu0
    %v1012 = vpop.f32.mrb[0].mxu0
    %1013 = vdwg.mxu0
    %1014 = vmatprep.subr.bf16.mxu0 %v741
    %1015 = vmatpush1.bf16.msra.mxu0 %v740
    %1016 = vmatprep.subr.bf16.mxu0 %v743
    %1017 = vmatpush1.bf16.msra.mxu0 %v742
    %1018 = vmatprep.subr.bf16.mxu0 %v745
    %1019 = vmatpush1.bf16.msra.mxu0 %v744
    %1020 = vmatprep.subr.bf16.mxu0 %v747
    %1021 = vmatpush1.bf16.msra.mxu0 %v746
    %1022 = vmatprep.subr.bf16.mxu0 %v749
    %1023 = vmatpush1.bf16.msra.mxu0 %v748
    %1024 = vmatprep.subr.bf16.mxu0 %v751
    %1025 = vmatpush1.bf16.msra.mxu0 %v750
    %1026 = vmatprep.subr.bf16.mxu0 %v753
    %1027 = vmatpush1.bf16.msra.mxu0 %v752
    %1028 = vmatprep.subr.bf16.mxu0 %v755
    %1029 = vmatpush1.bf16.msra.mxu0 %v754
    %1030 = vmatprep.subr.bf16.mxu0 %v757
    %1031 = vmatpush1.bf16.msra.mxu0 %v756
    %1032 = vmatprep.subr.bf16.mxu0 %v759
    %1033 = vmatpush1.bf16.msra.mxu0 %v758
    %1034 = vmatprep.subr.bf16.mxu0 %v761
    %1035 = vmatpush1.bf16.msra.mxu0 %v760
    %1036 = vmatprep.subr.bf16.mxu0 %v763
    %1037 = vmatpush1.bf16.msra.mxu0 %v762
    %1038 = vmatprep.subr.bf16.mxu0 %v765
    %1039 = vmatpush1.bf16.msra.mxu0 %v764
    %1040 = vmatprep.subr.bf16.mxu0 %v767
    %1041 = vmatpush1.bf16.msra.mxu0 %v766
    %1042 = vmatprep.subr.bf16.mxu0 %v769
    %1043 = vmatpush1.bf16.msra.mxu0 %v768
    %1044 = vmatprep.subr.bf16.mxu0 %v771
    %1045 = vmatpush1.bf16.msra.mxu0 %v770
    %1046 = vmatprep.mubr.bf16.mxu0 %v281
    %1047 = vmatmul.mubr.bf16.gmra.mrb[0].mxu0 %v280
    %v1048 = vpop.f32.mrb[0].mxu0
    %v1049 = vadd.f32 %v1008, %v1048
    %v1050 = vpop.f32.mrb[0].mxu0
    %v1051 = vadd.f32 %v1010, %v1050
    %v1052 = vpop.f32.mrb[0].mxu0
    %v1053 = vpop.f32.mrb[0].mxu0
    %1054 = vdwg.mxu0
    %1055 = vmatprep.subr.bf16.mxu0 %v773
    %1056 = vmatpush1.bf16.msra.mxu0 %v772
    %1057 = vmatprep.subr.bf16.mxu0 %v775
    %1058 = vmatpush1.bf16.msra.mxu0 %v774
    %1059 = vmatprep.subr.bf16.mxu0 %v777
    %1060 = vmatpush1.bf16.msra.mxu0 %v776
    %1061 = vmatprep.subr.bf16.mxu0 %v779
    %1062 = vmatpush1.bf16.msra.mxu0 %v778
    %1063 = vmatprep.subr.bf16.mxu0 %v781
    %1064 = vmatpush1.bf16.msra.mxu0 %v780
    %1065 = vmatprep.subr.bf16.mxu0 %v783
    %1066 = vmatpush1.bf16.msra.mxu0 %v782
    %1067 = vmatprep.subr.bf16.mxu0 %v785
    %1068 = vmatpush1.bf16.msra.mxu0 %v784
    %1069 = vmatprep.subr.bf16.mxu0 %v787
    %1070 = vmatpush1.bf16.msra.mxu0 %v786
    %1071 = vmatprep.subr.bf16.mxu0 %v789
    %1072 = vmatpush1.bf16.msra.mxu0 %v788
    %1073 = vmatprep.subr.bf16.mxu0 %v791
    %1074 = vmatpush1.bf16.msra.mxu0 %v790
    %1075 = vmatprep.subr.bf16.mxu0 %v793
    %1076 = vmatpush1.bf16.msra.mxu0 %v792
    %1077 = vmatprep.subr.bf16.mxu0 %v795
    %1078 = vmatpush1.bf16.msra.mxu0 %v794
    %1079 = vmatprep.subr.bf16.mxu0 %v797
    %1080 = vmatpush1.bf16.msra.mxu0 %v796
    %1081 = vmatprep.subr.bf16.mxu0 %v799
    %1082 = vmatpush1.bf16.msra.mxu0 %v798
    %1083 = vmatprep.subr.bf16.mxu0 %v801
    %1084 = vmatpush1.bf16.msra.mxu0 %v800
    %1085 = vmatprep.subr.bf16.mxu0 %v803
    %1086 = vmatpush1.bf16.msra.mxu0 %v802
    %1087 = vmatprep.mubr.bf16.mxu0 %v283
    %1088 = vmatmul.mubr.bf16.gmra.mrb[0].mxu0 %v282
    %v1089 = vpop.f32.mrb[0].mxu0
    %v1090 = vadd.f32 %v1049, %v1089
    %v1091 = vpop.f32.mrb[0].mxu0
    %v1092 = vadd.f32 %v1051, %v1091
    %v1093 = vpop.f32.mrb[0].mxu0
    %v1094 = vpop.f32.mrb[0].mxu0
    %1095 = vdwg.mxu0
    %vm1096 = vcmp.gt.f32.partialorder %v1090, 0.0
    %vm1097 = vcmp.gt.f32.partialorder %v1092, 0.0
    %v1098 = vmul.f32 %v1090, 0.2
    %v1099 = vmul.f32 %v1092, 0.2
    %v1100 = vsel %vm1096, %v1090, %v1098
    %v1101 = vsel %vm1097, %v1092, %v1099
    %v1102 = vpack.c.bf16 %v1100, %v1100
    %v1103 = vpack.c.bf16 %v1101, %v1101
    %v1104 = vld [vmem:[#allocation7] sm:$0xff]
    %v1105 = vld [vmem:[#allocation7 + $0x8] sm:$0xff]
    %v1106 = vld [vmem:[#allocation7 + $0x10] sm:$0xff]
    %v1107 = vld [vmem:[#allocation7 + $0x18] sm:$0xff]
    %v1108 = vld [vmem:[#allocation7 + $0x20] sm:$0xff]
    %v1109 = vld [vmem:[#allocation7 + $0x28] sm:$0xff]
    %v1110 = vld [vmem:[#allocation7 + $0x30] sm:$0xff]
    %v1111 = vld [vmem:[#allocation7 + $0x38] sm:$0xff]
    %v1112 = vld [vmem:[#allocation7 + $0x40] sm:$0xff]
    %v1113 = vld [vmem:[#allocation7 + $0x48] sm:$0xff]
    %v1114 = vld [vmem:[#allocation7 + $0x50] sm:$0xff]
    %v1115 = vld [vmem:[#allocation7 + $0x58] sm:$0xff]
    %v1116 = vld [vmem:[#allocation7 + $0x60] sm:$0xff]
    %v1117 = vld [vmem:[#allocation7 + $0x68] sm:$0xff]
    %v1118 = vld [vmem:[#allocation7 + $0x70] sm:$0xff]
    %v1119 = vld [vmem:[#allocation7 + $0x78] sm:$0xff]
    %v1120 = vld [vmem:[#allocation7 + $0x80] sm:$0xff]
    %v1121 = vld [vmem:[#allocation7 + $0x88] sm:$0xff]
    %v1122 = vld [vmem:[#allocation7 + $0x90] sm:$0xff]
    %v1123 = vld [vmem:[#allocation7 + $0x98] sm:$0xff]
    %v1124 = vld [vmem:[#allocation7 + $0xa0] sm:$0xff]
    %v1125 = vld [vmem:[#allocation7 + $0xa8] sm:$0xff]
    %v1126 = vld [vmem:[#allocation7 + $0xb0] sm:$0xff]
    %v1127 = vld [vmem:[#allocation7 + $0xb8] sm:$0xff]
    %v1128 = vld [vmem:[#allocation7 + $0xc0] sm:$0xff]
    %v1129 = vld [vmem:[#allocation7 + $0xc8] sm:$0xff]
    %v1130 = vld [vmem:[#allocation7 + $0xd0] sm:$0xff]
    %v1131 = vld [vmem:[#allocation7 + $0xd8] sm:$0xff]
    %v1132 = vld [vmem:[#allocation7 + $0xe0] sm:$0xff]
    %v1133 = vld [vmem:[#allocation7 + $0xe8] sm:$0xff]
    %v1134 = vld [vmem:[#allocation7 + $0xf0] sm:$0xff]
    %v1135 = vld [vmem:[#allocation7 + $0xf8] sm:$0xff]
    %v1136 = vld [vmem:[%s4] sm:$0x3]
    %v1138 = vlaneseq
    %v1139 = vshrl.u32 %v1138, 7
    %v1140 = vsub.s32 0, %v1139
    %v1141 = vrot.slane %v1136, %v1140
    %v1142 = vlaneseq
    %v1143 = vshrl.u32 %v1142, 7
    %v1144 = vsub.s32 1, %v1143
    %v1145 = vrot.slane %v1136, %v1144
    %v1180 = vunpack.c.l.b16 %v1104
    %v1181 = vunpack.c.h.b16 %v1104
    %v1182 = vunpack.c.l.b16 %v1105
    %v1183 = vunpack.c.h.b16 %v1105
    %v1184 = vunpack.c.l.b16 %v1106
    %v1185 = vunpack.c.h.b16 %v1106
    %v1186 = vunpack.c.l.b16 %v1107
    %v1187 = vunpack.c.h.b16 %v1107
    %v1188 = vunpack.c.l.b16 %v1108
    %v1189 = vunpack.c.h.b16 %v1108
    %v1190 = vunpack.c.l.b16 %v1109
    %v1191 = vunpack.c.h.b16 %v1109
    %v1192 = vunpack.c.l.b16 %v1110
    %v1193 = vunpack.c.h.b16 %v1110
    %v1194 = vunpack.c.l.b16 %v1111
    %v1195 = vunpack.c.h.b16 %v1111
    %v1196 = vunpack.c.l.b16 %v1112
    %v1197 = vunpack.c.h.b16 %v1112
    %v1198 = vunpack.c.l.b16 %v1113
    %v1199 = vunpack.c.h.b16 %v1113
    %v1200 = vunpack.c.l.b16 %v1114
    %v1201 = vunpack.c.h.b16 %v1114
    %v1202 = vunpack.c.l.b16 %v1115
    %v1203 = vunpack.c.h.b16 %v1115
    %v1204 = vunpack.c.l.b16 %v1116
    %v1205 = vunpack.c.h.b16 %v1116
    %v1206 = vunpack.c.l.b16 %v1117
    %v1207 = vunpack.c.h.b16 %v1117
    %v1208 = vunpack.c.l.b16 %v1118
    %v1209 = vunpack.c.h.b16 %v1118
    %v1210 = vunpack.c.l.b16 %v1119
    %v1211 = vunpack.c.h.b16 %v1119
    %v1212 = vunpack.c.l.b16 %v1120
    %v1213 = vunpack.c.h.b16 %v1120
    %v1214 = vunpack.c.l.b16 %v1121
    %v1215 = vunpack.c.h.b16 %v1121
    %v1216 = vunpack.c.l.b16 %v1122
    %v1217 = vunpack.c.h.b16 %v1122
    %v1218 = vunpack.c.l.b16 %v1123
    %v1219 = vunpack.c.h.b16 %v1123
    %v1220 = vunpack.c.l.b16 %v1124
    %v1221 = vunpack.c.h.b16 %v1124
    %v1222 = vunpack.c.l.b16 %v1125
    %v1223 = vunpack.c.h.b16 %v1125
    %v1224 = vunpack.c.l.b16 %v1126
    %v1225 = vunpack.c.h.b16 %v1126
    %v1226 = vunpack.c.l.b16 %v1127
    %v1227 = vunpack.c.h.b16 %v1127
    %v1228 = vunpack.c.l.b16 %v1128
    %v1229 = vunpack.c.h.b16 %v1128
    %v1230 = vunpack.c.l.b16 %v1129
    %v1231 = vunpack.c.h.b16 %v1129
    %v1232 = vunpack.c.l.b16 %v1130
    %v1233 = vunpack.c.h.b16 %v1130
    %v1234 = vunpack.c.l.b16 %v1131
    %v1235 = vunpack.c.h.b16 %v1131
    %v1236 = vunpack.c.l.b16 %v1132
    %v1237 = vunpack.c.h.b16 %v1132
    %v1238 = vunpack.c.l.b16 %v1133
    %v1239 = vunpack.c.h.b16 %v1133
    %v1240 = vunpack.c.l.b16 %v1134
    %v1241 = vunpack.c.h.b16 %v1134
    %v1242 = vunpack.c.l.b16 %v1135
    %v1243 = vunpack.c.h.b16 %v1135
    %v1244 = vpack.c.b16 %v1182, %v1180
    %v1245 = vpack.c.b16 %v1183, %v1181
    %v1246 = vpack.c.b16 %v1186, %v1184
    %v1247 = vpack.c.b16 %v1187, %v1185
    %v1248 = vpack.c.b16 %v1190, %v1188
    %v1249 = vpack.c.b16 %v1191, %v1189
    %v1250 = vpack.c.b16 %v1194, %v1192
    %v1251 = vpack.c.b16 %v1195, %v1193
    %v1252 = vpack.c.b16 %v1198, %v1196
    %v1253 = vpack.c.b16 %v1199, %v1197
    %v1254 = vpack.c.b16 %v1202, %v1200
    %v1255 = vpack.c.b16 %v1203, %v1201
    %v1256 = vpack.c.b16 %v1206, %v1204
    %v1257 = vpack.c.b16 %v1207, %v1205
    %v1258 = vpack.c.b16 %v1210, %v1208
    %v1259 = vpack.c.b16 %v1211, %v1209
    %v1260 = vpack.c.b16 %v1214, %v1212
    %v1261 = vpack.c.b16 %v1215, %v1213
    %v1262 = vpack.c.b16 %v1218, %v1216
    %v1263 = vpack.c.b16 %v1219, %v1217
    %v1264 = vpack.c.b16 %v1222, %v1220
    %v1265 = vpack.c.b16 %v1223, %v1221
    %v1266 = vpack.c.b16 %v1226, %v1224
    %v1267 = vpack.c.b16 %v1227, %v1225
    %v1268 = vpack.c.b16 %v1230, %v1228
    %v1269 = vpack.c.b16 %v1231, %v1229
    %v1270 = vpack.c.b16 %v1234, %v1232
    %v1271 = vpack.c.b16 %v1235, %v1233
    %v1272 = vpack.c.b16 %v1238, %v1236
    %v1273 = vpack.c.b16 %v1239, %v1237
    %v1274 = vpack.c.b16 %v1242, %v1240
    %v1275 = vpack.c.b16 %v1243, %v1241
    %1308 = vmatprep.subr.bf16.mxu0 %v1245
    %1309 = vmatpush1.bf16.msra.mxu0 %v1244
    %1310 = vmatprep.subr.bf16.mxu0 %v1247
    %1311 = vmatpush1.bf16.msra.mxu0 %v1246
    %1312 = vmatprep.subr.bf16.mxu0 %v1249
    %1313 = vmatpush1.bf16.msra.mxu0 %v1248
    %1314 = vmatprep.subr.bf16.mxu0 %v1251
    %1315 = vmatpush1.bf16.msra.mxu0 %v1250
    %1316 = vmatprep.subr.bf16.mxu0 %v1253
    %1317 = vmatpush1.bf16.msra.mxu0 %v1252
    %1318 = vmatprep.subr.bf16.mxu0 %v1255
    %1319 = vmatpush1.bf16.msra.mxu0 %v1254
    %1320 = vmatprep.subr.bf16.mxu0 %v1257
    %1321 = vmatpush1.bf16.msra.mxu0 %v1256
    %1322 = vmatprep.subr.bf16.mxu0 %v1259
    %1323 = vmatpush1.bf16.msra.mxu0 %v1258
    %1324 = vmatprep.subr.bf16.mxu0 %v1261
    %1325 = vmatpush1.bf16.msra.mxu0 %v1260
    %1326 = vmatprep.subr.bf16.mxu0 %v1263
    %1327 = vmatpush1.bf16.msra.mxu0 %v1262
    %1328 = vmatprep.subr.bf16.mxu0 %v1265
    %1329 = vmatpush1.bf16.msra.mxu0 %v1264
    %1330 = vmatprep.subr.bf16.mxu0 %v1267
    %1331 = vmatpush1.bf16.msra.mxu0 %v1266
    %1332 = vmatprep.subr.bf16.mxu0 %v1269
    %1333 = vmatpush1.bf16.msra.mxu0 %v1268
    %1334 = vmatprep.subr.bf16.mxu0 %v1271
    %1335 = vmatpush1.bf16.msra.mxu0 %v1270
    %1336 = vmatprep.subr.bf16.mxu0 %v1273
    %1337 = vmatpush1.bf16.msra.mxu0 %v1272
    %1338 = vmatprep.subr.bf16.mxu0 %v1275
    %1339 = vmatpush1.bf16.msra.mxu0 %v1274
    %1340 = vmatprep.mubr.bf16.mxu0 %v1103
    %1341 = vmatmul.mubr.bf16.gmra.mrb[0].mxu0 %v1102
    %v1342 = vpop.f32.mrb[0].mxu0
    %v1343 = vadd.f32 %v1141, %v1342
    %v1344 = vpop.f32.mrb[0].mxu0
    %v1345 = vadd.f32 %v1145, %v1344
    %v1346 = vpop.f32.mrb[0].mxu0
    %v1347 = vpop.f32.mrb[0].mxu0
    %1348 = vdwg.mxu0
    %vm1349 = vcmp.gt.f32.partialorder %v1343, 0.0
    %vm1350 = vcmp.gt.f32.partialorder %v1345, 0.0
    %v1351 = vmul.f32 %v1343, 0.2
    %v1352 = vmul.f32 %v1345, 0.2
    %v1353 = vsel %vm1349, %v1343, %v1351
    %v1354 = vsel %vm1350, %v1345, %v1352
    %v1355 = vpack.c.bf16 %v1353, %v1353
    %v1356 = vpack.c.bf16 %v1354, %v1354
    %v1357 = vld [vmem:[#allocation8] sm:$0xff]
    %v1358 = vld [vmem:[#allocation8 + $0x8] sm:$0xff]
    %v1359 = vld [vmem:[#allocation8 + $0x10] sm:$0xff]
    %v1360 = vld [vmem:[#allocation8 + $0x18] sm:$0xff]
    %v1361 = vld [vmem:[#allocation8 + $0x20] sm:$0xff]
    %v1362 = vld [vmem:[#allocation8 + $0x28] sm:$0xff]
    %v1363 = vld [vmem:[#allocation8 + $0x30] sm:$0xff]
    %v1364 = vld [vmem:[#allocation8 + $0x38] sm:$0xff]
    %v1365 = vld [vmem:[#allocation8 + $0x40] sm:$0xff]
    %v1366 = vld [vmem:[#allocation8 + $0x48] sm:$0xff]
    %v1367 = vld [vmem:[#allocation8 + $0x50] sm:$0xff]
    %v1368 = vld [vmem:[#allocation8 + $0x58] sm:$0xff]
    %v1369 = vld [vmem:[#allocation8 + $0x60] sm:$0xff]
    %v1370 = vld [vmem:[#allocation8 + $0x68] sm:$0xff]
    %v1371 = vld [vmem:[#allocation8 + $0x70] sm:$0xff]
    %v1372 = vld [vmem:[#allocation8 + $0x78] sm:$0xff]
    %v1373 = vld [vmem:[#allocation8 + $0x80] sm:$0xff]
    %v1374 = vld [vmem:[#allocation8 + $0x88] sm:$0xff]
    %v1375 = vld [vmem:[#allocation8 + $0x90] sm:$0xff]
    %v1376 = vld [vmem:[#allocation8 + $0x98] sm:$0xff]
    %v1377 = vld [vmem:[#allocation8 + $0xa0] sm:$0xff]
    %v1378 = vld [vmem:[#allocation8 + $0xa8] sm:$0xff]
    %v1379 = vld [vmem:[#allocation8 + $0xb0] sm:$0xff]
    %v1380 = vld [vmem:[#allocation8 + $0xb8] sm:$0xff]
    %v1381 = vld [vmem:[#allocation8 + $0xc0] sm:$0xff]
    %v1382 = vld [vmem:[#allocation8 + $0xc8] sm:$0xff]
    %v1383 = vld [vmem:[#allocation8 + $0xd0] sm:$0xff]
    %v1384 = vld [vmem:[#allocation8 + $0xd8] sm:$0xff]
    %v1385 = vld [vmem:[#allocation8 + $0xe0] sm:$0xff]
    %v1386 = vld [vmem:[#allocation8 + $0xe8] sm:$0xff]
    %v1387 = vld [vmem:[#allocation8 + $0xf0] sm:$0xff]
    %v1388 = vld [vmem:[#allocation8 + $0xf8] sm:$0xff]
    %v1389 = vld [vmem:[%s6] sm:$0x3]
    %v1391 = vlaneseq
    %v1392 = vshrl.u32 %v1391, 7
    %v1393 = vsub.s32 0, %v1392
    %v1394 = vrot.slane %v1389, %v1393
    %v1395 = vlaneseq
    %v1396 = vshrl.u32 %v1395, 7
    %v1397 = vsub.s32 1, %v1396
    %v1398 = vrot.slane %v1389, %v1397
    %v1433 = vunpack.c.l.b16 %v1357
    %v1434 = vunpack.c.h.b16 %v1357
    %v1435 = vunpack.c.l.b16 %v1358
    %v1436 = vunpack.c.h.b16 %v1358
    %v1437 = vunpack.c.l.b16 %v1359
    %v1438 = vunpack.c.h.b16 %v1359
    %v1439 = vunpack.c.l.b16 %v1360
    %v1440 = vunpack.c.h.b16 %v1360
    %v1441 = vunpack.c.l.b16 %v1361
    %v1442 = vunpack.c.h.b16 %v1361
    %v1443 = vunpack.c.l.b16 %v1362
    %v1444 = vunpack.c.h.b16 %v1362
    %v1445 = vunpack.c.l.b16 %v1363
    %v1446 = vunpack.c.h.b16 %v1363
    %v1447 = vunpack.c.l.b16 %v1364
    %v1448 = vunpack.c.h.b16 %v1364
    %v1449 = vunpack.c.l.b16 %v1365
    %v1450 = vunpack.c.h.b16 %v1365
    %v1451 = vunpack.c.l.b16 %v1366
    %v1452 = vunpack.c.h.b16 %v1366
    %v1453 = vunpack.c.l.b16 %v1367
    %v1454 = vunpack.c.h.b16 %v1367
    %v1455 = vunpack.c.l.b16 %v1368
    %v1456 = vunpack.c.h.b16 %v1368
    %v1457 = vunpack.c.l.b16 %v1369
    %v1458 = vunpack.c.h.b16 %v1369
    %v1459 = vunpack.c.l.b16 %v1370
    %v1460 = vunpack.c.h.b16 %v1370
    %v1461 = vunpack.c.l.b16 %v1371
    %v1462 = vunpack.c.h.b16 %v1371
    %v1463 = vunpack.c.l.b16 %v1372
    %v1464 = vunpack.c.h.b16 %v1372
    %v1465 = vunpack.c.l.b16 %v1373
    %v1466 = vunpack.c.h.b16 %v1373
    %v1467 = vunpack.c.l.b16 %v1374
    %v1468 = vunpack.c.h.b16 %v1374
    %v1469 = vunpack.c.l.b16 %v1375
    %v1470 = vunpack.c.h.b16 %v1375
    %v1471 = vunpack.c.l.b16 %v1376
    %v1472 = vunpack.c.h.b16 %v1376
    %v1473 = vunpack.c.l.b16 %v1377
    %v1474 = vunpack.c.h.b16 %v1377
    %v1475 = vunpack.c.l.b16 %v1378
    %v1476 = vunpack.c.h.b16 %v1378
    %v1477 = vunpack.c.l.b16 %v1379
    %v1478 = vunpack.c.h.b16 %v1379
    %v1479 = vunpack.c.l.b16 %v1380
    %v1480 = vunpack.c.h.b16 %v1380
    %v1481 = vunpack.c.l.b16 %v1381
    %v1482 = vunpack.c.h.b16 %v1381
    %v1483 = vunpack.c.l.b16 %v1382
    %v1484 = vunpack.c.h.b16 %v1382
    %v1485 = vunpack.c.l.b16 %v1383
    %v1486 = vunpack.c.h.b16 %v1383
    %v1487 = vunpack.c.l.b16 %v1384
    %v1488 = vunpack.c.h.b16 %v1384
    %v1489 = vunpack.c.l.b16 %v1385
    %v1490 = vunpack.c.h.b16 %v1385
    %v1491 = vunpack.c.l.b16 %v1386
    %v1492 = vunpack.c.h.b16 %v1386
    %v1493 = vunpack.c.l.b16 %v1387
    %v1494 = vunpack.c.h.b16 %v1387
    %v1495 = vunpack.c.l.b16 %v1388
    %v1496 = vunpack.c.h.b16 %v1388
    %v1497 = vpack.c.b16 %v1435, %v1433
    %v1498 = vpack.c.b16 %v1436, %v1434
    %v1499 = vpack.c.b16 %v1439, %v1437
    %v1500 = vpack.c.b16 %v1440, %v1438
    %v1501 = vpack.c.b16 %v1443, %v1441
    %v1502 = vpack.c.b16 %v1444, %v1442
    %v1503 = vpack.c.b16 %v1447, %v1445
    %v1504 = vpack.c.b16 %v1448, %v1446
    %v1505 = vpack.c.b16 %v1451, %v1449
    %v1506 = vpack.c.b16 %v1452, %v1450
    %v1507 = vpack.c.b16 %v1455, %v1453
    %v1508 = vpack.c.b16 %v1456, %v1454
    %v1509 = vpack.c.b16 %v1459, %v1457
    %v1510 = vpack.c.b16 %v1460, %v1458
    %v1511 = vpack.c.b16 %v1463, %v1461
    %v1512 = vpack.c.b16 %v1464, %v1462
    %v1513 = vpack.c.b16 %v1467, %v1465
    %v1514 = vpack.c.b16 %v1468, %v1466
    %v1515 = vpack.c.b16 %v1471, %v1469
    %v1516 = vpack.c.b16 %v1472, %v1470
    %v1517 = vpack.c.b16 %v1475, %v1473
    %v1518 = vpack.c.b16 %v1476, %v1474
    %v1519 = vpack.c.b16 %v1479, %v1477
    %v1520 = vpack.c.b16 %v1480, %v1478
    %v1521 = vpack.c.b16 %v1483, %v1481
    %v1522 = vpack.c.b16 %v1484, %v1482
    %v1523 = vpack.c.b16 %v1487, %v1485
    %v1524 = vpack.c.b16 %v1488, %v1486
    %v1525 = vpack.c.b16 %v1491, %v1489
    %v1526 = vpack.c.b16 %v1492, %v1490
    %v1527 = vpack.c.b16 %v1495, %v1493
    %v1528 = vpack.c.b16 %v1496, %v1494
    %1561 = vmatprep.subr.bf16.mxu0 %v1498
    %1562 = vmatpush1.bf16.msra.mxu0 %v1497
    %1563 = vmatprep.subr.bf16.mxu0 %v1500
    %1564 = vmatpush1.bf16.msra.mxu0 %v1499
    %1565 = vmatprep.subr.bf16.mxu0 %v1502
    %1566 = vmatpush1.bf16.msra.mxu0 %v1501
    %1567 = vmatprep.subr.bf16.mxu0 %v1504
    %1568 = vmatpush1.bf16.msra.mxu0 %v1503
    %1569 = vmatprep.subr.bf16.mxu0 %v1506
    %1570 = vmatpush1.bf16.msra.mxu0 %v1505
    %1571 = vmatprep.subr.bf16.mxu0 %v1508
    %1572 = vmatpush1.bf16.msra.mxu0 %v1507
    %1573 = vmatprep.subr.bf16.mxu0 %v1510
    %1574 = vmatpush1.bf16.msra.mxu0 %v1509
    %1575 = vmatprep.subr.bf16.mxu0 %v1512
    %1576 = vmatpush1.bf16.msra.mxu0 %v1511
    %1577 = vmatprep.subr.bf16.mxu0 %v1514
    %1578 = vmatpush1.bf16.msra.mxu0 %v1513
    %1579 = vmatprep.subr.bf16.mxu0 %v1516
    %1580 = vmatpush1.bf16.msra.mxu0 %v1515
    %1581 = vmatprep.subr.bf16.mxu0 %v1518
    %1582 = vmatpush1.bf16.msra.mxu0 %v1517
    %1583 = vmatprep.subr.bf16.mxu0 %v1520
    %1584 = vmatpush1.bf16.msra.mxu0 %v1519
    %1585 = vmatprep.subr.bf16.mxu0 %v1522
    %1586 = vmatpush1.bf16.msra.mxu0 %v1521
    %1587 = vmatprep.subr.bf16.mxu0 %v1524
    %1588 = vmatpush1.bf16.msra.mxu0 %v1523
    %1589 = vmatprep.subr.bf16.mxu0 %v1526
    %1590 = vmatpush1.bf16.msra.mxu0 %v1525
    %1591 = vmatprep.subr.bf16.mxu0 %v1528
    %1592 = vmatpush1.bf16.msra.mxu0 %v1527
    %1593 = vmatprep.mubr.bf16.mxu0 %v1356
    %1594 = vmatmul.mubr.bf16.gmra.mrb[0].mxu0 %v1355
    %v1595 = vpop.f32.mrb[0].mxu0
    %v1596 = vadd.f32 %v1394, %v1595
    %v1597 = vpop.f32.mrb[0].mxu0
    %v1598 = vadd.f32 %v1398, %v1597
    %v1599 = vpop.f32.mrb[0].mxu0
    %v1600 = vpop.f32.mrb[0].mxu0
    %1601 = vdwg.mxu0
    %vm1602 = vcmp.gt.f32.partialorder %v1596, 0.0
    %vm1603 = vcmp.gt.f32.partialorder %v1598, 0.0
    %v1604 = vmul.f32 %v1596, 0.2
    %v1605 = vmul.f32 %v1598, 0.2
    %v1606 = vsel %vm1602, %v1596, %v1604
    %v1607 = vsel %vm1603, %v1598, %v1605
    %v1608 = vpack.c.bf16 %v1606, %v1606
    %v1609 = vpack.c.bf16 %v1607, %v1607
    %v1610 = vld [vmem:[#allocation10] sm:$0xff]
    %v1611 = vld [vmem:[#allocation10 + $0x8] sm:$0xff]
    %v1612 = vld [vmem:[#allocation10 + $0x10] sm:$0xff]
    %v1613 = vld [vmem:[#allocation10 + $0x18] sm:$0xff]
    %v1614 = vld [vmem:[#allocation10 + $0x20] sm:$0xff]
    %v1615 = vld [vmem:[#allocation10 + $0x28] sm:$0xff]
    %v1616 = vld [vmem:[#allocation10 + $0x30] sm:$0xff]
    %v1617 = vld [vmem:[#allocation10 + $0x38] sm:$0xff]
    %v1618 = vld [vmem:[#allocation10 + $0x40] sm:$0xff]
    %v1619 = vld [vmem:[#allocation10 + $0x48] sm:$0xff]
    %v1620 = vld [vmem:[#allocation10 + $0x50] sm:$0xff]
    %v1621 = vld [vmem:[#allocation10 + $0x58] sm:$0xff]
    %v1622 = vld [vmem:[#allocation10 + $0x60] sm:$0xff]
    %v1623 = vld [vmem:[#allocation10 + $0x68] sm:$0xff]
    %v1624 = vld [vmem:[#allocation10 + $0x70] sm:$0xff]
    %v1625 = vld [vmem:[#allocation10 + $0x78] sm:$0xff]
    %v1626 = vld [vmem:[#allocation10 + $0x80] sm:$0xff]
    %v1627 = vld [vmem:[#allocation10 + $0x88] sm:$0xff]
    %v1628 = vld [vmem:[#allocation10 + $0x90] sm:$0xff]
    %v1629 = vld [vmem:[#allocation10 + $0x98] sm:$0xff]
    %v1630 = vld [vmem:[#allocation10 + $0xa0] sm:$0xff]
    %v1631 = vld [vmem:[#allocation10 + $0xa8] sm:$0xff]
    %v1632 = vld [vmem:[#allocation10 + $0xb0] sm:$0xff]
    %v1633 = vld [vmem:[#allocation10 + $0xb8] sm:$0xff]
    %v1634 = vld [vmem:[#allocation10 + $0xc0] sm:$0xff]
    %v1635 = vld [vmem:[#allocation10 + $0xc8] sm:$0xff]
    %v1636 = vld [vmem:[#allocation10 + $0xd0] sm:$0xff]
    %v1637 = vld [vmem:[#allocation10 + $0xd8] sm:$0xff]
    %v1638 = vld [vmem:[#allocation10 + $0xe0] sm:$0xff]
    %v1639 = vld [vmem:[#allocation10 + $0xe8] sm:$0xff]
    %v1640 = vld [vmem:[#allocation10 + $0xf0] sm:$0xff]
    %v1641 = vld [vmem:[#allocation10 + $0xf8] sm:$0xff]
    %v1642 = vld [vmem:[%s8] sm:$0x3]
    %v1644 = vlaneseq
    %v1645 = vshrl.u32 %v1644, 7
    %v1646 = vsub.s32 0, %v1645
    %v1647 = vrot.slane %v1642, %v1646
    %v1648 = vlaneseq
    %v1649 = vshrl.u32 %v1648, 7
    %v1650 = vsub.s32 1, %v1649
    %v1651 = vrot.slane %v1642, %v1650
    %v1686 = vunpack.c.l.b16 %v1610
    %v1687 = vunpack.c.h.b16 %v1610
    %v1688 = vunpack.c.l.b16 %v1611
    %v1689 = vunpack.c.h.b16 %v1611
    %v1690 = vunpack.c.l.b16 %v1612
    %v1691 = vunpack.c.h.b16 %v1612
    %v1692 = vunpack.c.l.b16 %v1613
    %v1693 = vunpack.c.h.b16 %v1613
    %v1694 = vunpack.c.l.b16 %v1614
    %v1695 = vunpack.c.h.b16 %v1614
    %v1696 = vunpack.c.l.b16 %v1615
    %v1697 = vunpack.c.h.b16 %v1615
    %v1698 = vunpack.c.l.b16 %v1616
    %v1699 = vunpack.c.h.b16 %v1616
    %v1700 = vunpack.c.l.b16 %v1617
    %v1701 = vunpack.c.h.b16 %v1617
    %v1702 = vunpack.c.l.b16 %v1618
    %v1703 = vunpack.c.h.b16 %v1618
    %v1704 = vunpack.c.l.b16 %v1619
    %v1705 = vunpack.c.h.b16 %v1619
    %v1706 = vunpack.c.l.b16 %v1620
    %v1707 = vunpack.c.h.b16 %v1620
    %v1708 = vunpack.c.l.b16 %v1621
    %v1709 = vunpack.c.h.b16 %v1621
    %v1710 = vunpack.c.l.b16 %v1622
    %v1711 = vunpack.c.h.b16 %v1622
    %v1712 = vunpack.c.l.b16 %v1623
    %v1713 = vunpack.c.h.b16 %v1623
    %v1714 = vunpack.c.l.b16 %v1624
    %v1715 = vunpack.c.h.b16 %v1624
    %v1716 = vunpack.c.l.b16 %v1625
    %v1717 = vunpack.c.h.b16 %v1625
    %v1718 = vunpack.c.l.b16 %v1626
    %v1719 = vunpack.c.h.b16 %v1626
    %v1720 = vunpack.c.l.b16 %v1627
    %v1721 = vunpack.c.h.b16 %v1627
    %v1722 = vunpack.c.l.b16 %v1628
    %v1723 = vunpack.c.h.b16 %v1628
    %v1724 = vunpack.c.l.b16 %v1629
    %v1725 = vunpack.c.h.b16 %v1629
    %v1726 = vunpack.c.l.b16 %v1630
    %v1727 = vunpack.c.h.b16 %v1630
    %v1728 = vunpack.c.l.b16 %v1631
    %v1729 = vunpack.c.h.b16 %v1631
    %v1730 = vunpack.c.l.b16 %v1632
    %v1731 = vunpack.c.h.b16 %v1632
    %v1732 = vunpack.c.l.b16 %v1633
    %v1733 = vunpack.c.h.b16 %v1633
    %v1734 = vunpack.c.l.b16 %v1634
    %v1735 = vunpack.c.h.b16 %v1634
    %v1736 = vunpack.c.l.b16 %v1635
    %v1737 = vunpack.c.h.b16 %v1635
    %v1738 = vunpack.c.l.b16 %v1636
    %v1739 = vunpack.c.h.b16 %v1636
    %v1740 = vunpack.c.l.b16 %v1637
    %v1741 = vunpack.c.h.b16 %v1637
    %v1742 = vunpack.c.l.b16 %v1638
    %v1743 = vunpack.c.h.b16 %v1638
    %v1744 = vunpack.c.l.b16 %v1639
    %v1745 = vunpack.c.h.b16 %v1639
    %v1746 = vunpack.c.l.b16 %v1640
    %v1747 = vunpack.c.h.b16 %v1640
    %v1748 = vunpack.c.l.b16 %v1641
    %v1749 = vunpack.c.h.b16 %v1641
    %v1750 = vpack.c.b16 %v1688, %v1686
    %v1751 = vpack.c.b16 %v1689, %v1687
    %v1752 = vpack.c.b16 %v1692, %v1690
    %v1753 = vpack.c.b16 %v1693, %v1691
    %v1754 = vpack.c.b16 %v1696, %v1694
    %v1755 = vpack.c.b16 %v1697, %v1695
    %v1756 = vpack.c.b16 %v1700, %v1698
    %v1757 = vpack.c.b16 %v1701, %v1699
    %v1758 = vpack.c.b16 %v1704, %v1702
    %v1759 = vpack.c.b16 %v1705, %v1703
    %v1760 = vpack.c.b16 %v1708, %v1706
    %v1761 = vpack.c.b16 %v1709, %v1707
    %v1762 = vpack.c.b16 %v1712, %v1710
    %v1763 = vpack.c.b16 %v1713, %v1711
    %v1764 = vpack.c.b16 %v1716, %v1714
    %v1765 = vpack.c.b16 %v1717, %v1715
    %v1766 = vpack.c.b16 %v1720, %v1718
    %v1767 = vpack.c.b16 %v1721, %v1719
    %v1768 = vpack.c.b16 %v1724, %v1722
    %v1769 = vpack.c.b16 %v1725, %v1723
    %v1770 = vpack.c.b16 %v1728, %v1726
    %v1771 = vpack.c.b16 %v1729, %v1727
    %v1772 = vpack.c.b16 %v1732, %v1730
    %v1773 = vpack.c.b16 %v1733, %v1731
    %v1774 = vpack.c.b16 %v1736, %v1734
    %v1775 = vpack.c.b16 %v1737, %v1735
    %v1776 = vpack.c.b16 %v1740, %v1738
    %v1777 = vpack.c.b16 %v1741, %v1739
    %v1778 = vpack.c.b16 %v1744, %v1742
    %v1779 = vpack.c.b16 %v1745, %v1743
    %v1780 = vpack.c.b16 %v1748, %v1746
    %v1781 = vpack.c.b16 %v1749, %v1747
    %1814 = vmatprep.subr.bf16.mxu0 %v1751
    %1815 = vmatpush1.bf16.msra.mxu0 %v1750
    %1816 = vmatprep.subr.bf16.mxu0 %v1753
    %1817 = vmatpush1.bf16.msra.mxu0 %v1752
    %1818 = vmatprep.subr.bf16.mxu0 %v1755
    %1819 = vmatpush1.bf16.msra.mxu0 %v1754
    %1820 = vmatprep.subr.bf16.mxu0 %v1757
    %1821 = vmatpush1.bf16.msra.mxu0 %v1756
    %1822 = vmatprep.subr.bf16.mxu0 %v1759
    %1823 = vmatpush1.bf16.msra.mxu0 %v1758
    %1824 = vmatprep.subr.bf16.mxu0 %v1761
    %1825 = vmatpush1.bf16.msra.mxu0 %v1760
    %1826 = vmatprep.subr.bf16.mxu0 %v1763
    %1827 = vmatpush1.bf16.msra.mxu0 %v1762
    %1828 = vmatprep.subr.bf16.mxu0 %v1765
    %1829 = vmatpush1.bf16.msra.mxu0 %v1764
    %1830 = vmatprep.subr.bf16.mxu0 %v1767
    %1831 = vmatpush1.bf16.msra.mxu0 %v1766
    %1832 = vmatprep.subr.bf16.mxu0 %v1769
    %1833 = vmatpush1.bf16.msra.mxu0 %v1768
    %1834 = vmatprep.subr.bf16.mxu0 %v1771
    %1835 = vmatpush1.bf16.msra.mxu0 %v1770
    %1836 = vmatprep.subr.bf16.mxu0 %v1773
    %1837 = vmatpush1.bf16.msra.mxu0 %v1772
    %1838 = vmatprep.subr.bf16.mxu0 %v1775
    %1839 = vmatpush1.bf16.msra.mxu0 %v1774
    %1840 = vmatprep.subr.bf16.mxu0 %v1777
    %1841 = vmatpush1.bf16.msra.mxu0 %v1776
    %1842 = vmatprep.subr.bf16.mxu0 %v1779
    %1843 = vmatpush1.bf16.msra.mxu0 %v1778
    %1844 = vmatprep.subr.bf16.mxu0 %v1781
    %1845 = vmatpush1.bf16.msra.mxu0 %v1780
    %1846 = vmatprep.mubr.bf16.mxu0 %v1609
    %1847 = vmatmul.mubr.bf16.gmra.mrb[0].mxu0 %v1608
    %v1848 = vpop.f32.mrb[0].mxu0
    %v1849 = vadd.f32 %v1647, %v1848
    %v1850 = vpop.f32.mrb[0].mxu0
    %v1851 = vadd.f32 %v1651, %v1850
    %v1852 = vpop.f32.mrb[0].mxu0
    %v1853 = vpop.f32.mrb[0].mxu0
    %1854 = vdwg.mxu0
    %vm1855 = vcmp.gt.f32.partialorder %v1849, 0.0
    %vm1856 = vcmp.gt.f32.partialorder %v1851, 0.0
    %v1857 = vmul.f32 %v1849, 0.2
    %v1858 = vmul.f32 %v1851, 0.2
    %v1859 = vsel %vm1855, %v1849, %v1857
    %v1860 = vsel %vm1856, %v1851, %v1858
    %v1861 = vpack.c.bf16 %v1859, %v1859
    %v1862 = vpack.c.bf16 %v1860, %v1860
    %v1863 = vld [vmem:[#allocation11] sm:$0xf]
    %v1864 = vld [vmem:[#allocation11 + $0x4] sm:$0xf]
    %v1865 = vld [vmem:[#allocation11 + $0x8] sm:$0xf]
    %v1866 = vld [vmem:[#allocation11 + $0xc] sm:$0xf]
    %v1867 = vld [vmem:[#allocation11 + $0x10] sm:$0xf]
    %v1868 = vld [vmem:[#allocation11 + $0x14] sm:$0xf]
    %v1869 = vld [vmem:[#allocation11 + $0x18] sm:$0xf]
    %v1870 = vld [vmem:[#allocation11 + $0x1c] sm:$0xf]
    %v1871 = vld [vmem:[#allocation11 + $0x20] sm:$0xf]
    %v1872 = vld [vmem:[#allocation11 + $0x24] sm:$0xf]
    %v1873 = vld [vmem:[#allocation11 + $0x28] sm:$0xf]
    %v1874 = vld [vmem:[#allocation11 + $0x2c] sm:$0xf]
    %v1875 = vld [vmem:[#allocation11 + $0x30] sm:$0xf]
    %v1876 = vld [vmem:[#allocation11 + $0x34] sm:$0xf]
    %v1877 = vld [vmem:[#allocation11 + $0x38] sm:$0xf]
    %v1878 = vld [vmem:[#allocation11 + $0x3c] sm:$0xf]
    %v1879 = vld [vmem:[#allocation11 + $0x40] sm:$0xf]
    %v1880 = vld [vmem:[#allocation11 + $0x44] sm:$0xf]
    %v1881 = vld [vmem:[#allocation11 + $0x48] sm:$0xf]
    %v1882 = vld [vmem:[#allocation11 + $0x4c] sm:$0xf]
    %v1883 = vld [vmem:[#allocation11 + $0x50] sm:$0xf]
    %v1884 = vld [vmem:[#allocation11 + $0x54] sm:$0xf]
    %v1885 = vld [vmem:[#allocation11 + $0x58] sm:$0xf]
    %v1886 = vld [vmem:[#allocation11 + $0x5c] sm:$0xf]
    %v1887 = vld [vmem:[#allocation11 + $0x60] sm:$0xf]
    %v1888 = vld [vmem:[#allocation11 + $0x64] sm:$0xf]
    %v1889 = vld [vmem:[#allocation11 + $0x68] sm:$0xf]
    %v1890 = vld [vmem:[#allocation11 + $0x6c] sm:$0xf]
    %v1891 = vld [vmem:[#allocation11 + $0x70] sm:$0xf]
    %v1892 = vld [vmem:[#allocation11 + $0x74] sm:$0xf]
    %v1893 = vld [vmem:[#allocation11 + $0x78] sm:$0xf]
    %v1894 = vld [vmem:[#allocation11 + $0x7c] sm:$0xf]
    %v1895 = vld [vmem:[%s10] sm:$0x1]
    %v1897 = vlaneseq
    %v1898 = vshrl.u32 %v1897, 7
    %v1899 = vsub.s32 0, %v1898
    %v1900 = vrot.slane %v1895, %v1899
    %v1934 = vunpack.c.l.b16 %v1863
    %v1935 = vunpack.c.l.b16 %v1864
    %v1936 = vunpack.c.l.b16 %v1865
    %v1937 = vunpack.c.l.b16 %v1866
    %v1938 = vunpack.c.l.b16 %v1867
    %v1939 = vunpack.c.l.b16 %v1868
    %v1940 = vunpack.c.l.b16 %v1869
    %v1941 = vunpack.c.l.b16 %v1870
    %v1942 = vunpack.c.l.b16 %v1871
    %v1943 = vunpack.c.l.b16 %v1872
    %v1944 = vunpack.c.l.b16 %v1873
    %v1945 = vunpack.c.l.b16 %v1874
    %v1946 = vunpack.c.l.b16 %v1875
    %v1947 = vunpack.c.l.b16 %v1876
    %v1948 = vunpack.c.l.b16 %v1877
    %v1949 = vunpack.c.l.b16 %v1878
    %v1950 = vunpack.c.l.b16 %v1879
    %v1951 = vunpack.c.l.b16 %v1880
    %v1952 = vunpack.c.l.b16 %v1881
    %v1953 = vunpack.c.l.b16 %v1882
    %v1954 = vunpack.c.l.b16 %v1883
    %v1955 = vunpack.c.l.b16 %v1884
    %v1956 = vunpack.c.l.b16 %v1885
    %v1957 = vunpack.c.l.b16 %v1886
    %v1958 = vunpack.c.l.b16 %v1887
    %v1959 = vunpack.c.l.b16 %v1888
    %v1960 = vunpack.c.l.b16 %v1889
    %v1961 = vunpack.c.l.b16 %v1890
    %v1962 = vunpack.c.l.b16 %v1891
    %v1963 = vunpack.c.l.b16 %v1892
    %v1964 = vunpack.c.l.b16 %v1893
    %v1965 = vunpack.c.l.b16 %v1894
    %v1966 = vpack.c.b16 %v1935, %v1934
    %v1967 = vpack.c.b16 %v1937, %v1936
    %v1968 = vpack.c.b16 %v1939, %v1938
    %v1969 = vpack.c.b16 %v1941, %v1940
    %v1970 = vpack.c.b16 %v1943, %v1942
    %v1971 = vpack.c.b16 %v1945, %v1944
    %v1972 = vpack.c.b16 %v1947, %v1946
    %v1973 = vpack.c.b16 %v1949, %v1948
    %v1974 = vpack.c.b16 %v1951, %v1950
    %v1975 = vpack.c.b16 %v1953, %v1952
    %v1976 = vpack.c.b16 %v1955, %v1954
    %v1977 = vpack.c.b16 %v1957, %v1956
    %v1978 = vpack.c.b16 %v1959, %v1958
    %v1979 = vpack.c.b16 %v1961, %v1960
    %v1980 = vpack.c.b16 %v1963, %v1962
    %v1981 = vpack.c.b16 %v1965, %v1964
    %1998 = vmatprep.subr.bf16.mxu0 0
    %1999 = vmatpush1.bf16.msra.mxu0 %v1966
    %2000 = vmatprep.subr.bf16.mxu0 0
    %2001 = vmatpush1.bf16.msra.mxu0 %v1967
    %2002 = vmatprep.subr.bf16.mxu0 0
    %2003 = vmatpush1.bf16.msra.mxu0 %v1968
    %2004 = vmatprep.subr.bf16.mxu0 0
    %2005 = vmatpush1.bf16.msra.mxu0 %v1969
    %2006 = vmatprep.subr.bf16.mxu0 0
    %2007 = vmatpush1.bf16.msra.mxu0 %v1970
    %2008 = vmatprep.subr.bf16.mxu0 0
    %2009 = vmatpush1.bf16.msra.mxu0 %v1971
    %2010 = vmatprep.subr.bf16.mxu0 0
    %2011 = vmatpush1.bf16.msra.mxu0 %v1972
    %2012 = vmatprep.subr.bf16.mxu0 0
    %2013 = vmatpush1.bf16.msra.mxu0 %v1973
    %2014 = vmatprep.subr.bf16.mxu0 0
    %2015 = vmatpush1.bf16.msra.mxu0 %v1974
    %2016 = vmatprep.subr.bf16.mxu0 0
    %2017 = vmatpush1.bf16.msra.mxu0 %v1975
    %2018 = vmatprep.subr.bf16.mxu0 0
    %2019 = vmatpush1.bf16.msra.mxu0 %v1976
    %2020 = vmatprep.subr.bf16.mxu0 0
    %2021 = vmatpush1.bf16.msra.mxu0 %v1977
    %2022 = vmatprep.subr.bf16.mxu0 0
    %2023 = vmatpush1.bf16.msra.mxu0 %v1978
    %2024 = vmatprep.subr.bf16.mxu0 0
    %2025 = vmatpush1.bf16.msra.mxu0 %v1979
    %2026 = vmatprep.subr.bf16.mxu0 0
    %2027 = vmatpush1.bf16.msra.mxu0 %v1980
    %2028 = vmatprep.subr.bf16.mxu0 0
    %2029 = vmatpush1.bf16.msra.mxu0 %v1981
    %2030 = vmatprep.mubr.bf16.mxu0 %v1862
    %2031 = vmatmul.mubr.bf16.gmra.mrb[0].mxu0 %v1861
    %v2032 = vpop.f32.mrb[0].mxu0
    %v2033 = vadd.f32 %v1900, %v2032
    %v2034 = vpop.f32.mrb[0].mxu0
    %v2035 = vpop.f32.mrb[0].mxu0
    %v2036 = vpop.f32.mrb[0].mxu0
    %2037 = vdwg.mxu0
    %2038 = vst [vmem:[#allocation13] sm:$0xff] %v2033
    // Predicated region
    $region70: #{tpu_custom_call.1} parent=1 // pred_check
      _
    $region71: #{tpu_custom_call.1} parent=1 // pred_check_branch
      %2040 = sbr.rel (0) target = $region73
    $region72: #{tpu_custom_call.1} parent=1 // pred_region
      %s2042 = ssub.s32 128, 128
      %2043 = vsyncadd [#allocation4], %s2042
      %s2045 = sshll.u32 [#allocation13], 4
      %s2046 = int_to_ptr.vmem [resolvable:$true] %s2045
      %2048 = dma.vmem_to_hbm [thread:$0]  %s2046, 128, %s11, [#allocation4]
    $region73: #{tpu_custom_call.1} parent=1 // pred_fallthru
      _
    // Predicated region
    $region74: #{tpu_custom_call.1} parent=1 // pred_check
      _
    $region75: #{tpu_custom_call.1} parent=1 // pred_check_branch
      %2050 = sbr.rel (0) target = $region77
    $region76: #{tpu_custom_call.1} parent=1 // pred_region
      %2051 = dma.done [#allocation4], 128
    $region77: #{tpu_custom_call.1} parent=1 // pred_fallthru
      _
    %2052 = vsyncpa [#allocation3], 1
    %2053 = vsyncpa [#allocation6], 1
    %2054 = vsyncpa [#allocation9], 1
    %2055 = vsyncpa [#allocation12], 1
    %2056 = vsyncpa [#allocation4], 1

</llo_original>
